<compile_context>
chip_gen: v6e
topology: v6e:2x2x1
jax: 0.10.0
libtpu: 0.0.40
codegen_flags: <defaults>
</compile_context>

<pallas_src>
import functools

import jax
import jax.numpy as jnp
from jax.experimental import pallas as pl


# ------------------------------ fused forward kernel ------------------------------
def _fused_lstm_kernel(*refs, B, T, H, D, num_layers):
    """Inputs : x (T, B, D) bf16 time-major,
                w_ih0 (D, 4H) bf16,
                per layer l: w_rec_l bf16 ((H, 8H) = [w_hh_l | w_ih_{l+1}], or (H, 4H) for
                the last layer), bias_l (1, 4H) f32,
                fc_w (H, O) bf16, fc_b (1, O) f32.
       Output : (B, O) f32."""
    L = num_layers
    x_ref = refs[0]
    wih0_ref = refs[1]
    wrec_refs = [refs[2 + 2 * l] for l in range(L)]
    bias_refs = [refs[3 + 2 * l] for l in range(L)]
    fcw_ref = refs[2 + 2 * L]
    fcb_ref = refs[3 + 2 * L]
    out_ref = refs[4 + 2 * L]

    f32 = jnp.float32
    bf16 = jnp.bfloat16

    # Hoist weight / bias loads out of the unrolled wave loop.
    wih0 = wih0_ref[...]
    wrec = [r[...] for r in wrec_refs]
    bias = [r[...] for r in bias_refs]

    h = [jnp.zeros((B, H), f32) for _ in range(L)]
    c = [jnp.zeros((B, H), f32) for _ in range(L)]
    hrec = [jnp.zeros((B, 4 * H), f32) for _ in range(L)]  # h_l[t-1] @ w_hh_l
    gin = [None] * L                                       # pending x-projection per layer

    def cell(g, c_prev):
        # Gate columns were permuted to [i, f, o, g]: one contiguous 3H sigmoid + one H tanh.
        sig = jax.nn.sigmoid(g[:, : 3 * H])
        g_g = jnp.tanh(g[:, 3 * H:])
        i_g = sig[:, 0:H]
        f_g = sig[:, H:2 * H]
        o_g = sig[:, 2 * H:3 * H]
        c_new = f_g * c_prev + i_g * g_g
        h_new = o_g * jnp.tanh(c_new)
        return h_new, c_new

    # Wavefront over the (timestep, layer) grid: wave w, layer l handles t = w - l.
    # T and L are small & static -> full Python unroll; one basic block, all slices static.
    # TODO(synk): beyond T~32, switch to a T-tiled grid / lax.fori_loop(unroll=2-4).
    for w in range(T + L - 1):
        new_state = {}
        for l in range(L):
            t = w - l
            if not (0 <= t < T):
                continue
            if l == 0:
                # Layer-0 input projection fused in-kernel (no gx0 HBM round trip).
                g_in = jnp.dot(x_ref[t], wih0, preferred_element_type=f32)
            else:
                g_in = gin[l]      # h_{l-1}[t] @ w_ih_l, produced by the previous wave
            g = g_in + hrec[l] + bias[l]
            h_new, c_new = cell(g, c[l])
            # Shared-LHS fused matmul: h_l[t] @ [w_hh_l | w_ih_{l+1}]  -> (B, 8H)
            # (last layer: just w_hh_l -> (B, 4H)).
            z = jnp.dot(h_new.astype(bf16), wrec[l], preferred_element_type=f32)
            new_state[l] = (h_new, c_new, z)
        # Commit after the whole wave so intra-wave updates stay data-independent.
        for l, (h_new, c_new, z) in new_state.items():
            h[l] = h_new
            c[l] = c_new
            hrec[l] = z[:, : 4 * H]
            if l + 1 < L:
                gin[l + 1] = z[:, 4 * H: 8 * H]

    # TODO(synk): nn.Dropout / nn.LSTM inter-layer dropout are train-mode only; eval = identity.
    # TODO(synk): if output_size grows, pad O to a multiple of 128 for a lane-dense store.
    out_ref[...] = (
        jnp.dot(h[L - 1].astype(bf16), fcw_ref[...], preferred_element_type=f32)
        + fcb_ref[...]
    ).astype(out_ref.dtype)


# ----------------------------------- wrapper --------------------------------------
def _permute_gates(w, H):
    """Reorder gate blocks along the last dim: PyTorch [i, f, g, o] -> kernel [i, f, o, g]."""
    return jnp.concatenate(
        [w[..., 0:H], w[..., H:2 * H], w[..., 3 * H:4 * H], w[..., 2 * H:3 * H]], axis=-1
    )


def lstm_model_forward(params, x_bte, hidden_size):
    """x_bte: (B, T, input_size), batch_first like the PyTorch module. -> (B, output_size)."""
    layers = params["layers"]
    L = len(layers)
    B, T, D = x_bte.shape
    H = hidden_size
    O = params["fc_w_t"].shape[1]

    # Time-major input for tile-aligned per-step loads inside the kernel; bf16 MXU operand.
    x_tm = jnp.transpose(x_bte, (1, 0, 2)).astype(jnp.bfloat16)      # (T, B, D)

    wih = [_permute_gates(lp["w_ih_t"], H).astype(jnp.bfloat16) for lp in layers]
    whh = [_permute_gates(lp["w_hh_t"], H).astype(jnp.bfloat16) for lp in layers]
    bias = [_permute_gates(lp["bias"], H).astype(jnp.float32) for lp in layers]

    # Shared-LHS fusion: h_l[t] feeds both its own recurrence (w_hh_l) and the next layer's
    # input gates (w_ih_{l+1}) -> concatenate along N into one (H, 8H) weight per layer.
    wrec = []
    for l in range(L):
        if l + 1 < L:
            wrec.append(jnp.concatenate([whh[l], wih[l + 1]], axis=1))   # (H, 8H)
        else:
            wrec.append(whh[l])                                          # (H, 4H)

    args = [x_tm, wih[0]]
    in_specs = [
        pl.BlockSpec((T, B, D), lambda: (0, 0, 0)),
        pl.BlockSpec((D, 4 * H), lambda: (0, 0)),
    ]
    for l in range(L):
        args += [wrec[l], bias[l]]
        in_specs += [
            pl.BlockSpec(wrec[l].shape, lambda: (0, 0)),
            pl.BlockSpec((1, 4 * H), lambda: (0, 0)),
        ]
    args += [params["fc_w_t"].astype(jnp.bfloat16), params["fc_b"].astype(jnp.float32)]
    in_specs += [
        pl.BlockSpec((H, O), lambda: (0, 0)),
        pl.BlockSpec((1, O), lambda: (0, 0)),
    ]

    kernel = functools.partial(_fused_lstm_kernel, B=B, T=T, H=H, D=D, num_layers=L)
    return pl.pallas_call(
        kernel,
        out_shape=jax.ShapeDtypeStruct((B, O), jnp.float32),
        in_specs=in_specs,
        out_specs=pl.BlockSpec((B, O), lambda: (0, 0)),
    )(*args)
    # TODO(synk): on v7x (2 TCs) with B >= 2 sublane tiles, add a batch-tile grid axis with
    #             dimension_semantics=("parallel",); for large T/H, tile T and set
    #             pltpu.CompilerParams(vmem_limit_bytes=...) explicitly.


# ------------------------------- Parameter init --------------------------------
def xavier_uniform(key, shape):
    fan_out, fan_in = shape
    limit = jnp.sqrt(6.0 / (fan_in + fan_out))
    return jax.random.uniform(key, shape, jnp.float32, -limit, limit)


def orthogonal_init(key, shape):
    rows, cols = shape
    n = max(rows, cols)
    a = jax.random.normal(key, (n, n), jnp.float32)
    q, r = jnp.linalg.qr(a)
    q = q * jnp.sign(jnp.diag(r))[None, :]
    return q[:rows, :cols]


def init_lstm_model_params(key, input_size, hidden_size, num_layers, output_size):
    params = {"layers": []}
    for layer in range(num_layers):
        d_in = input_size if layer == 0 else hidden_size
        key, k1, k2 = jax.random.split(key, 3)
        w_ih = xavier_uniform(k1, (4 * hidden_size, d_in))        # PyTorch shape
        w_hh = orthogonal_init(k2, (4 * hidden_size, hidden_size))
        b_ih = jnp.zeros((4 * hidden_size,), jnp.float32)
        b_hh = jnp.zeros((4 * hidden_size,), jnp.float32)
        params["layers"].append(
            {
                "w_ih_t": jnp.transpose(w_ih),                    # (d_in, 4H)
                "w_hh_t": jnp.transpose(w_hh),                    # (H, 4H)
                "bias": (b_ih + b_hh)[None, :],                   # (1, 4H)
            }
        )
    key, kf = jax.random.split(key)
    fc_w = xavier_uniform(kf, (output_size, hidden_size))
    params["fc_w_t"] = jnp.transpose(fc_w)                        # (H, O)
    params["fc_b"] = jnp.zeros((1, output_size), jnp.float32)
    return params


# ------------------------------- Pure-JAX reference ------------------------------
def _reference_forward(params, x_bte, hidden_size, matmul_dtype=jnp.float32):
    """PyTorch-order LSTM stack + Linear. matmul_dtype=bf16 mirrors the kernel's MXU
    operand precision (f32 accumulation, f32 state); f32 is the exact module semantics."""
    H = hidden_size
    dt = matmul_dtype

    def dot(a, b):
        return jnp.dot(a.astype(dt), b.astype(dt), preferred_element_type=jnp.float32)

    x = jnp.transpose(x_bte, (1, 0, 2)).astype(jnp.float32)       # (T, B, D)
    for lp in params["layers"]:
        B = x.shape[1]

        def step(carry, x_t, lp=lp):
            h, c = carry
            g = dot(x_t, lp["w_ih_t"]) + dot(h, lp["w_hh_t"]) + lp["bias"]
            i = jax.nn.sigmoid(g[:, 0 * H:1 * H])
            f = jax.nn.sigmoid(g[:, 1 * H:2 * H])
            gg = jnp.tanh(g[:, 2 * H:3 * H])
            o = jax.nn.sigmoid(g[:, 3 * H:4 * H])
            c = f * c + i * gg
            h = o * jnp.tanh(c)
            return (h, c), h

        init = (jnp.zeros((B, H), jnp.float32), jnp.zeros((B, H), jnp.float32))
        _, hs = jax.lax.scan(step, init, x)
        x = hs
    return dot(x[-1], params["fc_w_t"]) + params["fc_b"]


# ----------------------------------- Main ----------------------------------------
if __name__ == "__main__":
    input_size, hidden_size, num_layers, output_size = 16, 32, 2, 4
    B, T = 2, 8

    key = jax.random.PRNGKey(0)
    kp, kx = jax.random.split(key)
    params = init_lstm_model_params(kp, input_size, hidden_size, num_layers, output_size)
    x = jax.random.normal(kx, (B, T, input_size), jnp.float32)

    fwd = jax.jit(functools.partial(lstm_model_forward, hidden_size=hidden_size))
    out = jax.block_until_ready(fwd(params, x))
    assert out.shape == (B, output_size)

    # Structural check: reference mirroring the kernel's bf16-operand / f32-accum numerics.
    ref_bf16 = _reference_forward(params, x, hidden_size, matmul_dtype=jnp.bfloat16)
    assert jnp.allclose(out, ref_bf16, atol=1e-3, rtol=1e-3)

    # Fidelity sanity check against the exact f32 PyTorch semantics (bf16 MXU operands
    # introduce ~1e-3..1e-2 absolute error at these magnitudes).
    ref_f32 = _reference_forward(params, x, hidden_size, matmul_dtype=jnp.float32)
    assert jnp.allclose(out, ref_f32, atol=5e-2, rtol=5e-2)

    print("KERNEL_OK")
</pallas_src>

<mosaic_0001>
module attributes {stable_mosaic.version = 11 : i64} {
  func.func @_fused_lstm_kernel(%arg0: memref<8x2x16xbf16, #tpu.memory_space<vmem>>, %arg1: memref<16x128xbf16, #tpu.memory_space<vmem>>, %arg2: memref<32x256xbf16, #tpu.memory_space<vmem>>, %arg3: memref<1x128xf32, #tpu.memory_space<vmem>>, %arg4: memref<32x128xbf16, #tpu.memory_space<vmem>>, %arg5: memref<1x128xf32, #tpu.memory_space<vmem>>, %arg6: memref<32x4xbf16, #tpu.memory_space<vmem>>, %arg7: memref<1x4xf32, #tpu.memory_space<vmem>>, %arg8: memref<2x4xf32, #tpu.memory_space<vmem>>) attributes {dimension_semantics = [], scalar_prefetch = 0 : i64, scratch_operands = 0 : i64, tpu.core_type = #tpu.core_type<tc>} {
    %c0 = arith.constant 0 : index
    %c0_0 = arith.constant 0 : index
    %0 = vector.load %arg1[%c0, %c0_0] : memref<16x128xbf16, #tpu.memory_space<vmem>>, vector<16x128xbf16>
    %c0_1 = arith.constant 0 : index
    %c0_2 = arith.constant 0 : index
    %1 = vector.load %arg2[%c0_1, %c0_2] : memref<32x256xbf16, #tpu.memory_space<vmem>>, vector<32x256xbf16>
    %c0_3 = arith.constant 0 : index
    %c0_4 = arith.constant 0 : index
    %2 = vector.load %arg4[%c0_3, %c0_4] : memref<32x128xbf16, #tpu.memory_space<vmem>>, vector<32x128xbf16>
    %c0_5 = arith.constant 0 : index
    %c0_6 = arith.constant 0 : index
    %3 = vector.load %arg3[%c0_5, %c0_6] : memref<1x128xf32, #tpu.memory_space<vmem>>, vector<1x128xf32>
    %c0_7 = arith.constant 0 : index
    %c0_8 = arith.constant 0 : index
    %4 = vector.load %arg5[%c0_7, %c0_8] : memref<1x128xf32, #tpu.memory_space<vmem>>, vector<1x128xf32>
    %cst = arith.constant 0.000000e+00 : f32
    %5 = vector.broadcast %cst : f32 to vector<2x32xf32>
    %cst_9 = arith.constant 0.000000e+00 : f32
    %6 = vector.broadcast %cst_9 : f32 to vector<2x32xf32>
    %cst_10 = arith.constant 0.000000e+00 : f32
    %7 = vector.broadcast %cst_10 : f32 to vector<2x128xf32>
    %cst_11 = arith.constant 0.000000e+00 : f32
    %8 = vector.broadcast %cst_11 : f32 to vector<2x128xf32>
    %c0_12 = arith.constant 0 : index
    %c0_13 = arith.constant 0 : index
    %c0_14 = arith.constant 0 : index
    %9 = vector.load %arg0[%c0_12, %c0_13, %c0_14] : memref<8x2x16xbf16, #tpu.memory_space<vmem>>, vector<1x2x16xbf16>
    %10 = vector.shape_cast %9 : vector<1x2x16xbf16> to vector<2x16xbf16>
    %cst_15 = arith.constant dense<0.000000e+00> : vector<2x128xf32>
    %11 = tpu.matmul %10, %0, %cst_15 {dimension_numbers = #tpu.dot_dimension_numbers<[1], [0], [0], [1], [0, 0, 1, 1], [], []>} : vector<2x16xbf16>, vector<16x128xbf16>, vector<2x128xf32> -> vector<2x128xf32>
    %12 = arith.addf %11, %7 : vector<2x128xf32>
    %13 = vector.broadcast %3 : vector<1x128xf32> to vector<2x128xf32>
    %14 = arith.addf %12, %13 : vector<2x128xf32>
    %15 = vector.extract_strided_slice %14 {offsets = [0, 0], sizes = [2, 96], strides = [1, 1]} : vector<2x128xf32> to vector<2x96xf32>
    %16 = arith.negf %15 : vector<2x96xf32>
    %17 = math.exp %16 : vector<2x96xf32>
    %cst_16 = arith.constant 1.000000e+00 : f32
    %18 = vector.broadcast %cst_16 : f32 to vector<2x96xf32>
    %19 = arith.addf %18, %17 : vector<2x96xf32>
    %20 = arith.divf %18, %19 : vector<2x96xf32>
    %21 = vector.extract_strided_slice %14 {offsets = [0, 96], sizes = [2, 32], strides = [1, 1]} : vector<2x128xf32> to vector<2x32xf32>
    %22 = math.tanh %21 : vector<2x32xf32>
    %23 = vector.extract_strided_slice %20 {offsets = [0, 0], sizes = [2, 32], strides = [1, 1]} : vector<2x96xf32> to vector<2x32xf32>
    %24 = vector.extract_strided_slice %20 {offsets = [0, 32], sizes = [2, 32], strides = [1, 1]} : vector<2x96xf32> to vector<2x32xf32>
    %25 = vector.extract_strided_slice %20 {offsets = [0, 64], sizes = [2, 32], strides = [1, 1]} : vector<2x96xf32> to vector<2x32xf32>
    %26 = arith.mulf %24, %5 : vector<2x32xf32>
    %27 = arith.mulf %23, %22 : vector<2x32xf32>
    %28 = arith.addf %26, %27 : vector<2x32xf32>
    %29 = math.tanh %28 : vector<2x32xf32>
    %30 = arith.mulf %25, %29 : vector<2x32xf32>
    %31 = arith.truncf %30 : vector<2x32xf32> to vector<2x32xbf16>
    %cst_17 = arith.constant dense<0.000000e+00> : vector<2x256xf32>
    %32 = tpu.matmul %31, %1, %cst_17 {dimension_numbers = #tpu.dot_dimension_numbers<[1], [0], [0], [1], [0, 0, 1, 1], [], []>} : vector<2x32xbf16>, vector<32x256xbf16>, vector<2x256xf32> -> vector<2x256xf32>
    %33 = vector.extract_strided_slice %32 {offsets = [0, 0], sizes = [2, 128], strides = [1, 1]} : vector<2x256xf32> to vector<2x128xf32>
    %34 = vector.extract_strided_slice %32 {offsets = [0, 128], sizes = [2, 128], strides = [1, 1]} : vector<2x256xf32> to vector<2x128xf32>
    %c1 = arith.constant 1 : index
    %c0_18 = arith.constant 0 : index
    %c0_19 = arith.constant 0 : index
    %35 = vector.load %arg0[%c1, %c0_18, %c0_19] : memref<8x2x16xbf16, #tpu.memory_space<vmem>>, vector<1x2x16xbf16>
    %36 = vector.shape_cast %35 : vector<1x2x16xbf16> to vector<2x16xbf16>
    %cst_20 = arith.constant dense<0.000000e+00> : vector<2x128xf32>
    %37 = tpu.matmul %36, %0, %cst_20 {dimension_numbers = #tpu.dot_dimension_numbers<[1], [0], [0], [1], [0, 0, 1, 1], [], []>} : vector<2x16xbf16>, vector<16x128xbf16>, vector<2x128xf32> -> vector<2x128xf32>
    %38 = arith.addf %37, %33 : vector<2x128xf32>
    %39 = vector.broadcast %3 : vector<1x128xf32> to vector<2x128xf32>
    %40 = arith.addf %38, %39 : vector<2x128xf32>
    %41 = vector.extract_strided_slice %40 {offsets = [0, 0], sizes = [2, 96], strides = [1, 1]} : vector<2x128xf32> to vector<2x96xf32>
    %42 = arith.negf %41 : vector<2x96xf32>
    %43 = math.exp %42 : vector<2x96xf32>
    %cst_21 = arith.constant 1.000000e+00 : f32
    %44 = vector.broadcast %cst_21 : f32 to vector<2x96xf32>
    %45 = arith.addf %44, %43 : vector<2x96xf32>
    %46 = arith.divf %44, %45 : vector<2x96xf32>
    %47 = vector.extract_strided_slice %40 {offsets = [0, 96], sizes = [2, 32], strides = [1, 1]} : vector<2x128xf32> to vector<2x32xf32>
    %48 = math.tanh %47 : vector<2x32xf32>
    %49 = vector.extract_strided_slice %46 {offsets = [0, 0], sizes = [2, 32], strides = [1, 1]} : vector<2x96xf32> to vector<2x32xf32>
    %50 = vector.extract_strided_slice %46 {offsets = [0, 32], sizes = [2, 32], strides = [1, 1]} : vector<2x96xf32> to vector<2x32xf32>
    %51 = vector.extract_strided_slice %46 {offsets = [0, 64], sizes = [2, 32], strides = [1, 1]} : vector<2x96xf32> to vector<2x32xf32>
    %52 = arith.mulf %50, %28 : vector<2x32xf32>
    %53 = arith.mulf %49, %48 : vector<2x32xf32>
    %54 = arith.addf %52, %53 : vector<2x32xf32>
    %55 = math.tanh %54 : vector<2x32xf32>
    %56 = arith.mulf %51, %55 : vector<2x32xf32>
    %57 = arith.truncf %56 : vector<2x32xf32> to vector<2x32xbf16>
    %cst_22 = arith.constant dense<0.000000e+00> : vector<2x256xf32>
    %58 = tpu.matmul %57, %1, %cst_22 {dimension_numbers = #tpu.dot_dimension_numbers<[1], [0], [0], [1], [0, 0, 1, 1], [], []>} : vector<2x32xbf16>, vector<32x256xbf16>, vector<2x256xf32> -> vector<2x256xf32>
    %59 = arith.addf %34, %8 : vector<2x128xf32>
    %60 = vector.broadcast %4 : vector<1x128xf32> to vector<2x128xf32>
    %61 = arith.addf %59, %60 : vector<2x128xf32>
    %62 = vector.extract_strided_slice %61 {offsets = [0, 0], sizes = [2, 96], strides = [1, 1]} : vector<2x128xf32> to vector<2x96xf32>
    %63 = arith.negf %62 : vector<2x96xf32>
    %64 = math.exp %63 : vector<2x96xf32>
    %cst_23 = arith.constant 1.000000e+00 : f32
    %65 = vector.broadcast %cst_23 : f32 to vector<2x96xf32>
    %66 = arith.addf %65, %64 : vector<2x96xf32>
    %67 = arith.divf %65, %66 : vector<2x96xf32>
    %68 = vector.extract_strided_slice %61 {offsets = [0, 96], sizes = [2, 32], strides = [1, 1]} : vector<2x128xf32> to vector<2x32xf32>
    %69 = math.tanh %68 : vector<2x32xf32>
    %70 = vector.extract_strided_slice %67 {offsets = [0, 0], sizes = [2, 32], strides = [1, 1]} : vector<2x96xf32> to vector<2x32xf32>
    %71 = vector.extract_strided_slice %67 {offsets = [0, 32], sizes = [2, 32], strides = [1, 1]} : vector<2x96xf32> to vector<2x32xf32>
    %72 = vector.extract_strided_slice %67 {offsets = [0, 64], sizes = [2, 32], strides = [1, 1]} : vector<2x96xf32> to vector<2x32xf32>
    %73 = arith.mulf %71, %6 : vector<2x32xf32>
    %74 = arith.mulf %70, %69 : vector<2x32xf32>
    %75 = arith.addf %73, %74 : vector<2x32xf32>
    %76 = math.tanh %75 : vector<2x32xf32>
    %77 = arith.mulf %72, %76 : vector<2x32xf32>
    %78 = arith.truncf %77 : vector<2x32xf32> to vector<2x32xbf16>
    %cst_24 = arith.constant dense<0.000000e+00> : vector<2x128xf32>
    %79 = tpu.matmul %78, %2, %cst_24 {dimension_numbers = #tpu.dot_dimension_numbers<[1], [0], [0], [1], [0, 0, 1, 1], [], []>} : vector<2x32xbf16>, vector<32x128xbf16>, vector<2x128xf32> -> vector<2x128xf32>
    %80 = vector.extract_strided_slice %58 {offsets = [0, 0], sizes = [2, 128], strides = [1, 1]} : vector<2x256xf32> to vector<2x128xf32>
    %81 = vector.extract_strided_slice %58 {offsets = [0, 128], sizes = [2, 128], strides = [1, 1]} : vector<2x256xf32> to vector<2x128xf32>
    %c2 = arith.constant 2 : index
    %c0_25 = arith.constant 0 : index
    %c0_26 = arith.constant 0 : index
    %82 = vector.load %arg0[%c2, %c0_25, %c0_26] : memref<8x2x16xbf16, #tpu.memory_space<vmem>>, vector<1x2x16xbf16>
    %83 = vector.shape_cast %82 : vector<1x2x16xbf16> to vector<2x16xbf16>
    %cst_27 = arith.constant dense<0.000000e+00> : vector<2x128xf32>
    %84 = tpu.matmul %83, %0, %cst_27 {dimension_numbers = #tpu.dot_dimension_numbers<[1], [0], [0], [1], [0, 0, 1, 1], [], []>} : vector<2x16xbf16>, vector<16x128xbf16>, vector<2x128xf32> -> vector<2x128xf32>
    %85 = arith.addf %84, %80 : vector<2x128xf32>
    %86 = vector.broadcast %3 : vector<1x128xf32> to vector<2x128xf32>
    %87 = arith.addf %85, %86 : vector<2x128xf32>
    %88 = vector.extract_strided_slice %87 {offsets = [0, 0], sizes = [2, 96], strides = [1, 1]} : vector<2x128xf32> to vector<2x96xf32>
    %89 = arith.negf %88 : vector<2x96xf32>
    %90 = math.exp %89 : vector<2x96xf32>
    %cst_28 = arith.constant 1.000000e+00 : f32
    %91 = vector.broadcast %cst_28 : f32 to vector<2x96xf32>
    %92 = arith.addf %91, %90 : vector<2x96xf32>
    %93 = arith.divf %91, %92 : vector<2x96xf32>
    %94 = vector.extract_strided_slice %87 {offsets = [0, 96], sizes = [2, 32], strides = [1, 1]} : vector<2x128xf32> to vector<2x32xf32>
    %95 = math.tanh %94 : vector<2x32xf32>
    %96 = vector.extract_strided_slice %93 {offsets = [0, 0], sizes = [2, 32], strides = [1, 1]} : vector<2x96xf32> to vector<2x32xf32>
    %97 = vector.extract_strided_slice %93 {offsets = [0, 32], sizes = [2, 32], strides = [1, 1]} : vector<2x96xf32> to vector<2x32xf32>
    %98 = vector.extract_strided_slice %93 {offsets = [0, 64], sizes = [2, 32], strides = [1, 1]} : vector<2x96xf32> to vector<2x32xf32>
    %99 = arith.mulf %97, %54 : vector<2x32xf32>
    %100 = arith.mulf %96, %95 : vector<2x32xf32>
    %101 = arith.addf %99, %100 : vector<2x32xf32>
    %102 = math.tanh %101 : vector<2x32xf32>
    %103 = arith.mulf %98, %102 : vector<2x32xf32>
    %104 = arith.truncf %103 : vector<2x32xf32> to vector<2x32xbf16>
    %cst_29 = arith.constant dense<0.000000e+00> : vector<2x256xf32>
    %105 = tpu.matmul %104, %1, %cst_29 {dimension_numbers = #tpu.dot_dimension_numbers<[1], [0], [0], [1], [0, 0, 1, 1], [], []>} : vector<2x32xbf16>, vector<32x256xbf16>, vector<2x256xf32> -> vector<2x256xf32>
    %106 = arith.addf %81, %79 : vector<2x128xf32>
    %107 = vector.broadcast %4 : vector<1x128xf32> to vector<2x128xf32>
    %108 = arith.addf %106, %107 : vector<2x128xf32>
    %109 = vector.extract_strided_slice %108 {offsets = [0, 0], sizes = [2, 96], strides = [1, 1]} : vector<2x128xf32> to vector<2x96xf32>
    %110 = arith.negf %109 : vector<2x96xf32>
    %111 = math.exp %110 : vector<2x96xf32>
    %cst_30 = arith.constant 1.000000e+00 : f32
    %112 = vector.broadcast %cst_30 : f32 to vector<2x96xf32>
    %113 = arith.addf %112, %111 : vector<2x96xf32>
    %114 = arith.divf %112, %113 : vector<2x96xf32>
    %115 = vector.extract_strided_slice %108 {offsets = [0, 96], sizes = [2, 32], strides = [1, 1]} : vector<2x128xf32> to vector<2x32xf32>
    %116 = math.tanh %115 : vector<2x32xf32>
    %117 = vector.extract_strided_slice %114 {offsets = [0, 0], sizes = [2, 32], strides = [1, 1]} : vector<2x96xf32> to vector<2x32xf32>
    %118 = vector.extract_strided_slice %114 {offsets = [0, 32], sizes = [2, 32], strides = [1, 1]} : vector<2x96xf32> to vector<2x32xf32>
    %119 = vector.extract_strided_slice %114 {offsets = [0, 64], sizes = [2, 32], strides = [1, 1]} : vector<2x96xf32> to vector<2x32xf32>
    %120 = arith.mulf %118, %75 : vector<2x32xf32>
    %121 = arith.mulf %117, %116 : vector<2x32xf32>
    %122 = arith.addf %120, %121 : vector<2x32xf32>
    %123 = math.tanh %122 : vector<2x32xf32>
    %124 = arith.mulf %119, %123 : vector<2x32xf32>
    %125 = arith.truncf %124 : vector<2x32xf32> to vector<2x32xbf16>
    %cst_31 = arith.constant dense<0.000000e+00> : vector<2x128xf32>
    %126 = tpu.matmul %125, %2, %cst_31 {dimension_numbers = #tpu.dot_dimension_numbers<[1], [0], [0], [1], [0, 0, 1, 1], [], []>} : vector<2x32xbf16>, vector<32x128xbf16>, vector<2x128xf32> -> vector<2x128xf32>
    %127 = vector.extract_strided_slice %105 {offsets = [0, 0], sizes = [2, 128], strides = [1, 1]} : vector<2x256xf32> to vector<2x128xf32>
    %128 = vector.extract_strided_slice %105 {offsets = [0, 128], sizes = [2, 128], strides = [1, 1]} : vector<2x256xf32> to vector<2x128xf32>
    %c3 = arith.constant 3 : index
    %c0_32 = arith.constant 0 : index
    %c0_33 = arith.constant 0 : index
    %129 = vector.load %arg0[%c3, %c0_32, %c0_33] : memref<8x2x16xbf16, #tpu.memory_space<vmem>>, vector<1x2x16xbf16>
    %130 = vector.shape_cast %129 : vector<1x2x16xbf16> to vector<2x16xbf16>
    %cst_34 = arith.constant dense<0.000000e+00> : vector<2x128xf32>
    %131 = tpu.matmul %130, %0, %cst_34 {dimension_numbers = #tpu.dot_dimension_numbers<[1], [0], [0], [1], [0, 0, 1, 1], [], []>} : vector<2x16xbf16>, vector<16x128xbf16>, vector<2x128xf32> -> vector<2x128xf32>
    %132 = arith.addf %131, %127 : vector<2x128xf32>
    %133 = vector.broadcast %3 : vector<1x128xf32> to vector<2x128xf32>
    %134 = arith.addf %132, %133 : vector<2x128xf32>
    %135 = vector.extract_strided_slice %134 {offsets = [0, 0], sizes = [2, 96], strides = [1, 1]} : vector<2x128xf32> to vector<2x96xf32>
    %136 = arith.negf %135 : vector<2x96xf32>
    %137 = math.exp %136 : vector<2x96xf32>
    %cst_35 = arith.constant 1.000000e+00 : f32
    %138 = vector.broadcast %cst_35 : f32 to vector<2x96xf32>
    %139 = arith.addf %138, %137 : vector<2x96xf32>
    %140 = arith.divf %138, %139 : vector<2x96xf32>
    %141 = vector.extract_strided_slice %134 {offsets = [0, 96], sizes = [2, 32], strides = [1, 1]} : vector<2x128xf32> to vector<2x32xf32>
    %142 = math.tanh %141 : vector<2x32xf32>
    %143 = vector.extract_strided_slice %140 {offsets = [0, 0], sizes = [2, 32], strides = [1, 1]} : vector<2x96xf32> to vector<2x32xf32>
    %144 = vector.extract_strided_slice %140 {offsets = [0, 32], sizes = [2, 32], strides = [1, 1]} : vector<2x96xf32> to vector<2x32xf32>
    %145 = vector.extract_strided_slice %140 {offsets = [0, 64], sizes = [2, 32], strides = [1, 1]} : vector<2x96xf32> to vector<2x32xf32>
    %146 = arith.mulf %144, %101 : vector<2x32xf32>
    %147 = arith.mulf %143, %142 : vector<2x32xf32>
    %148 = arith.addf %146, %147 : vector<2x32xf32>
    %149 = math.tanh %148 : vector<2x32xf32>
    %150 = arith.mulf %145, %149 : vector<2x32xf32>
    %151 = arith.truncf %150 : vector<2x32xf32> to vector<2x32xbf16>
    %cst_36 = arith.constant dense<0.000000e+00> : vector<2x256xf32>
    %152 = tpu.matmul %151, %1, %cst_36 {dimension_numbers = #tpu.dot_dimension_numbers<[1], [0], [0], [1], [0, 0, 1, 1], [], []>} : vector<2x32xbf16>, vector<32x256xbf16>, vector<2x256xf32> -> vector<2x256xf32>
    %153 = arith.addf %128, %126 : vector<2x128xf32>
    %154 = vector.broadcast %4 : vector<1x128xf32> to vector<2x128xf32>
    %155 = arith.addf %153, %154 : vector<2x128xf32>
    %156 = vector.extract_strided_slice %155 {offsets = [0, 0], sizes = [2, 96], strides = [1, 1]} : vector<2x128xf32> to vector<2x96xf32>
    %157 = arith.negf %156 : vector<2x96xf32>
    %158 = math.exp %157 : vector<2x96xf32>
    %cst_37 = arith.constant 1.000000e+00 : f32
    %159 = vector.broadcast %cst_37 : f32 to vector<2x96xf32>
    %160 = arith.addf %159, %158 : vector<2x96xf32>
    %161 = arith.divf %159, %160 : vector<2x96xf32>
    %162 = vector.extract_strided_slice %155 {offsets = [0, 96], sizes = [2, 32], strides = [1, 1]} : vector<2x128xf32> to vector<2x32xf32>
    %163 = math.tanh %162 : vector<2x32xf32>
    %164 = vector.extract_strided_slice %161 {offsets = [0, 0], sizes = [2, 32], strides = [1, 1]} : vector<2x96xf32> to vector<2x32xf32>
    %165 = vector.extract_strided_slice %161 {offsets = [0, 32], sizes = [2, 32], strides = [1, 1]} : vector<2x96xf32> to vector<2x32xf32>
    %166 = vector.extract_strided_slice %161 {offsets = [0, 64], sizes = [2, 32], strides = [1, 1]} : vector<2x96xf32> to vector<2x32xf32>
    %167 = arith.mulf %165, %122 : vector<2x32xf32>
    %168 = arith.mulf %164, %163 : vector<2x32xf32>
    %169 = arith.addf %167, %168 : vector<2x32xf32>
    %170 = math.tanh %169 : vector<2x32xf32>
    %171 = arith.mulf %166, %170 : vector<2x32xf32>
    %172 = arith.truncf %171 : vector<2x32xf32> to vector<2x32xbf16>
    %cst_38 = arith.constant dense<0.000000e+00> : vector<2x128xf32>
    %173 = tpu.matmul %172, %2, %cst_38 {dimension_numbers = #tpu.dot_dimension_numbers<[1], [0], [0], [1], [0, 0, 1, 1], [], []>} : vector<2x32xbf16>, vector<32x128xbf16>, vector<2x128xf32> -> vector<2x128xf32>
    %174 = vector.extract_strided_slice %152 {offsets = [0, 0], sizes = [2, 128], strides = [1, 1]} : vector<2x256xf32> to vector<2x128xf32>
    %175 = vector.extract_strided_slice %152 {offsets = [0, 128], sizes = [2, 128], strides = [1, 1]} : vector<2x256xf32> to vector<2x128xf32>
    %c4 = arith.constant 4 : index
    %c0_39 = arith.constant 0 : index
    %c0_40 = arith.constant 0 : index
    %176 = vector.load %arg0[%c4, %c0_39, %c0_40] : memref<8x2x16xbf16, #tpu.memory_space<vmem>>, vector<1x2x16xbf16>
    %177 = vector.shape_cast %176 : vector<1x2x16xbf16> to vector<2x16xbf16>
    %cst_41 = arith.constant dense<0.000000e+00> : vector<2x128xf32>
    %178 = tpu.matmul %177, %0, %cst_41 {dimension_numbers = #tpu.dot_dimension_numbers<[1], [0], [0], [1], [0, 0, 1, 1], [], []>} : vector<2x16xbf16>, vector<16x128xbf16>, vector<2x128xf32> -> vector<2x128xf32>
    %179 = arith.addf %178, %174 : vector<2x128xf32>
    %180 = vector.broadcast %3 : vector<1x128xf32> to vector<2x128xf32>
    %181 = arith.addf %179, %180 : vector<2x128xf32>
    %182 = vector.extract_strided_slice %181 {offsets = [0, 0], sizes = [2, 96], strides = [1, 1]} : vector<2x128xf32> to vector<2x96xf32>
    %183 = arith.negf %182 : vector<2x96xf32>
    %184 = math.exp %183 : vector<2x96xf32>
    %cst_42 = arith.constant 1.000000e+00 : f32
    %185 = vector.broadcast %cst_42 : f32 to vector<2x96xf32>
    %186 = arith.addf %185, %184 : vector<2x96xf32>
    %187 = arith.divf %185, %186 : vector<2x96xf32>
    %188 = vector.extract_strided_slice %181 {offsets = [0, 96], sizes = [2, 32], strides = [1, 1]} : vector<2x128xf32> to vector<2x32xf32>
    %189 = math.tanh %188 : vector<2x32xf32>
    %190 = vector.extract_strided_slice %187 {offsets = [0, 0], sizes = [2, 32], strides = [1, 1]} : vector<2x96xf32> to vector<2x32xf32>
    %191 = vector.extract_strided_slice %187 {offsets = [0, 32], sizes = [2, 32], strides = [1, 1]} : vector<2x96xf32> to vector<2x32xf32>
    %192 = vector.extract_strided_slice %187 {offsets = [0, 64], sizes = [2, 32], strides = [1, 1]} : vector<2x96xf32> to vector<2x32xf32>
    %193 = arith.mulf %191, %148 : vector<2x32xf32>
    %194 = arith.mulf %190, %189 : vector<2x32xf32>
    %195 = arith.addf %193, %194 : vector<2x32xf32>
    %196 = math.tanh %195 : vector<2x32xf32>
    %197 = arith.mulf %192, %196 : vector<2x32xf32>
    %198 = arith.truncf %197 : vector<2x32xf32> to vector<2x32xbf16>
    %cst_43 = arith.constant dense<0.000000e+00> : vector<2x256xf32>
    %199 = tpu.matmul %198, %1, %cst_43 {dimension_numbers = #tpu.dot_dimension_numbers<[1], [0], [0], [1], [0, 0, 1, 1], [], []>} : vector<2x32xbf16>, vector<32x256xbf16>, vector<2x256xf32> -> vector<2x256xf32>
    %200 = arith.addf %175, %173 : vector<2x128xf32>
    %201 = vector.broadcast %4 : vector<1x128xf32> to vector<2x128xf32>
    %202 = arith.addf %200, %201 : vector<2x128xf32>
    %203 = vector.extract_strided_slice %202 {offsets = [0, 0], sizes = [2, 96], strides = [1, 1]} : vector<2x128xf32> to vector<2x96xf32>
    %204 = arith.negf %203 : vector<2x96xf32>
    %205 = math.exp %204 : vector<2x96xf32>
    %cst_44 = arith.constant 1.000000e+00 : f32
    %206 = vector.broadcast %cst_44 : f32 to vector<2x96xf32>
    %207 = arith.addf %206, %205 : vector<2x96xf32>
    %208 = arith.divf %206, %207 : vector<2x96xf32>
    %209 = vector.extract_strided_slice %202 {offsets = [0, 96], sizes = [2, 32], strides = [1, 1]} : vector<2x128xf32> to vector<2x32xf32>
    %210 = math.tanh %209 : vector<2x32xf32>
    %211 = vector.extract_strided_slice %208 {offsets = [0, 0], sizes = [2, 32], strides = [1, 1]} : vector<2x96xf32> to vector<2x32xf32>
    %212 = vector.extract_strided_slice %208 {offsets = [0, 32], sizes = [2, 32], strides = [1, 1]} : vector<2x96xf32> to vector<2x32xf32>
    %213 = vector.extract_strided_slice %208 {offsets = [0, 64], sizes = [2, 32], strides = [1, 1]} : vector<2x96xf32> to vector<2x32xf32>
    %214 = arith.mulf %212, %169 : vector<2x32xf32>
    %215 = arith.mulf %211, %210 : vector<2x32xf32>
    %216 = arith.addf %214, %215 : vector<2x32xf32>
    %217 = math.tanh %216 : vector<2x32xf32>
    %218 = arith.mulf %213, %217 : vector<2x32xf32>
    %219 = arith.truncf %218 : vector<2x32xf32> to vector<2x32xbf16>
    %cst_45 = arith.constant dense<0.000000e+00> : vector<2x128xf32>
    %220 = tpu.matmul %219, %2, %cst_45 {dimension_numbers = #tpu.dot_dimension_numbers<[1], [0], [0], [1], [0, 0, 1, 1], [], []>} : vector<2x32xbf16>, vector<32x128xbf16>, vector<2x128xf32> -> vector<2x128xf32>
    %221 = vector.extract_strided_slice %199 {offsets = [0, 0], sizes = [2, 128], strides = [1, 1]} : vector<2x256xf32> to vector<2x128xf32>
    %222 = vector.extract_strided_slice %199 {offsets = [0, 128], sizes = [2, 128], strides = [1, 1]} : vector<2x256xf32> to vector<2x128xf32>
    %c5 = arith.constant 5 : index
    %c0_46 = arith.constant 0 : index
    %c0_47 = arith.constant 0 : index
    %223 = vector.load %arg0[%c5, %c0_46, %c0_47] : memref<8x2x16xbf16, #tpu.memory_space<vmem>>, vector<1x2x16xbf16>
    %224 = vector.shape_cast %223 : vector<1x2x16xbf16> to vector<2x16xbf16>
    %cst_48 = arith.constant dense<0.000000e+00> : vector<2x128xf32>
    %225 = tpu.matmul %224, %0, %cst_48 {dimension_numbers = #tpu.dot_dimension_numbers<[1], [0], [0], [1], [0, 0, 1, 1], [], []>} : vector<2x16xbf16>, vector<16x128xbf16>, vector<2x128xf32> -> vector<2x128xf32>
    %226 = arith.addf %225, %221 : vector<2x128xf32>
    %227 = vector.broadcast %3 : vector<1x128xf32> to vector<2x128xf32>
    %228 = arith.addf %226, %227 : vector<2x128xf32>
    %229 = vector.extract_strided_slice %228 {offsets = [0, 0], sizes = [2, 96], strides = [1, 1]} : vector<2x128xf32> to vector<2x96xf32>
    %230 = arith.negf %229 : vector<2x96xf32>
    %231 = math.exp %230 : vector<2x96xf32>
    %cst_49 = arith.constant 1.000000e+00 : f32
    %232 = vector.broadcast %cst_49 : f32 to vector<2x96xf32>
    %233 = arith.addf %232, %231 : vector<2x96xf32>
    %234 = arith.divf %232, %233 : vector<2x96xf32>
    %235 = vector.extract_strided_slice %228 {offsets = [0, 96], sizes = [2, 32], strides = [1, 1]} : vector<2x128xf32> to vector<2x32xf32>
    %236 = math.tanh %235 : vector<2x32xf32>
    %237 = vector.extract_strided_slice %234 {offsets = [0, 0], sizes = [2, 32], strides = [1, 1]} : vector<2x96xf32> to vector<2x32xf32>
    %238 = vector.extract_strided_slice %234 {offsets = [0, 32], sizes = [2, 32], strides = [1, 1]} : vector<2x96xf32> to vector<2x32xf32>
    %239 = vector.extract_strided_slice %234 {offsets = [0, 64], sizes = [2, 32], strides = [1, 1]} : vector<2x96xf32> to vector<2x32xf32>
    %240 = arith.mulf %238, %195 : vector<2x32xf32>
    %241 = arith.mulf %237, %236 : vector<2x32xf32>
    %242 = arith.addf %240, %241 : vector<2x32xf32>
    %243 = math.tanh %242 : vector<2x32xf32>
    %244 = arith.mulf %239, %243 : vector<2x32xf32>
    %245 = arith.truncf %244 : vector<2x32xf32> to vector<2x32xbf16>
    %cst_50 = arith.constant dense<0.000000e+00> : vector<2x256xf32>
    %246 = tpu.matmul %245, %1, %cst_50 {dimension_numbers = #tpu.dot_dimension_numbers<[1], [0], [0], [1], [0, 0, 1, 1], [], []>} : vector<2x32xbf16>, vector<32x256xbf16>, vector<2x256xf32> -> vector<2x256xf32>
    %247 = arith.addf %222, %220 : vector<2x128xf32>
    %248 = vector.broadcast %4 : vector<1x128xf32> to vector<2x128xf32>
    %249 = arith.addf %247, %248 : vector<2x128xf32>
    %250 = vector.extract_strided_slice %249 {offsets = [0, 0], sizes = [2, 96], strides = [1, 1]} : vector<2x128xf32> to vector<2x96xf32>
    %251 = arith.negf %250 : vector<2x96xf32>
    %252 = math.exp %251 : vector<2x96xf32>
    %cst_51 = arith.constant 1.000000e+00 : f32
    %253 = vector.broadcast %cst_51 : f32 to vector<2x96xf32>
    %254 = arith.addf %253, %252 : vector<2x96xf32>
    %255 = arith.divf %253, %254 : vector<2x96xf32>
    %256 = vector.extract_strided_slice %249 {offsets = [0, 96], sizes = [2, 32], strides = [1, 1]} : vector<2x128xf32> to vector<2x32xf32>
    %257 = math.tanh %256 : vector<2x32xf32>
    %258 = vector.extract_strided_slice %255 {offsets = [0, 0], sizes = [2, 32], strides = [1, 1]} : vector<2x96xf32> to vector<2x32xf32>
    %259 = vector.extract_strided_slice %255 {offsets = [0, 32], sizes = [2, 32], strides = [1, 1]} : vector<2x96xf32> to vector<2x32xf32>
    %260 = vector.extract_strided_slice %255 {offsets = [0, 64], sizes = [2, 32], strides = [1, 1]} : vector<2x96xf32> to vector<2x32xf32>
    %261 = arith.mulf %259, %216 : vector<2x32xf32>
    %262 = arith.mulf %258, %257 : vector<2x32xf32>
    %263 = arith.addf %261, %262 : vector<2x32xf32>
    %264 = math.tanh %263 : vector<2x32xf32>
    %265 = arith.mulf %260, %264 : vector<2x32xf32>
    %266 = arith.truncf %265 : vector<2x32xf32> to vector<2x32xbf16>
    %cst_52 = arith.constant dense<0.000000e+00> : vector<2x128xf32>
    %267 = tpu.matmul %266, %2, %cst_52 {dimension_numbers = #tpu.dot_dimension_numbers<[1], [0], [0], [1], [0, 0, 1, 1], [], []>} : vector<2x32xbf16>, vector<32x128xbf16>, vector<2x128xf32> -> vector<2x128xf32>
    %268 = vector.extract_strided_slice %246 {offsets = [0, 0], sizes = [2, 128], strides = [1, 1]} : vector<2x256xf32> to vector<2x128xf32>
    %269 = vector.extract_strided_slice %246 {offsets = [0, 128], sizes = [2, 128], strides = [1, 1]} : vector<2x256xf32> to vector<2x128xf32>
    %c6 = arith.constant 6 : index
    %c0_53 = arith.constant 0 : index
    %c0_54 = arith.constant 0 : index
    %270 = vector.load %arg0[%c6, %c0_53, %c0_54] : memref<8x2x16xbf16, #tpu.memory_space<vmem>>, vector<1x2x16xbf16>
    %271 = vector.shape_cast %270 : vector<1x2x16xbf16> to vector<2x16xbf16>
    %cst_55 = arith.constant dense<0.000000e+00> : vector<2x128xf32>
    %272 = tpu.matmul %271, %0, %cst_55 {dimension_numbers = #tpu.dot_dimension_numbers<[1], [0], [0], [1], [0, 0, 1, 1], [], []>} : vector<2x16xbf16>, vector<16x128xbf16>, vector<2x128xf32> -> vector<2x128xf32>
    %273 = arith.addf %272, %268 : vector<2x128xf32>
    %274 = vector.broadcast %3 : vector<1x128xf32> to vector<2x128xf32>
    %275 = arith.addf %273, %274 : vector<2x128xf32>
    %276 = vector.extract_strided_slice %275 {offsets = [0, 0], sizes = [2, 96], strides = [1, 1]} : vector<2x128xf32> to vector<2x96xf32>
    %277 = arith.negf %276 : vector<2x96xf32>
    %278 = math.exp %277 : vector<2x96xf32>
    %cst_56 = arith.constant 1.000000e+00 : f32
    %279 = vector.broadcast %cst_56 : f32 to vector<2x96xf32>
    %280 = arith.addf %279, %278 : vector<2x96xf32>
    %281 = arith.divf %279, %280 : vector<2x96xf32>
    %282 = vector.extract_strided_slice %275 {offsets = [0, 96], sizes = [2, 32], strides = [1, 1]} : vector<2x128xf32> to vector<2x32xf32>
    %283 = math.tanh %282 : vector<2x32xf32>
    %284 = vector.extract_strided_slice %281 {offsets = [0, 0], sizes = [2, 32], strides = [1, 1]} : vector<2x96xf32> to vector<2x32xf32>
    %285 = vector.extract_strided_slice %281 {offsets = [0, 32], sizes = [2, 32], strides = [1, 1]} : vector<2x96xf32> to vector<2x32xf32>
    %286 = vector.extract_strided_slice %281 {offsets = [0, 64], sizes = [2, 32], strides = [1, 1]} : vector<2x96xf32> to vector<2x32xf32>
    %287 = arith.mulf %285, %242 : vector<2x32xf32>
    %288 = arith.mulf %284, %283 : vector<2x32xf32>
    %289 = arith.addf %287, %288 : vector<2x32xf32>
    %290 = math.tanh %289 : vector<2x32xf32>
    %291 = arith.mulf %286, %290 : vector<2x32xf32>
    %292 = arith.truncf %291 : vector<2x32xf32> to vector<2x32xbf16>
    %cst_57 = arith.constant dense<0.000000e+00> : vector<2x256xf32>
    %293 = tpu.matmul %292, %1, %cst_57 {dimension_numbers = #tpu.dot_dimension_numbers<[1], [0], [0], [1], [0, 0, 1, 1], [], []>} : vector<2x32xbf16>, vector<32x256xbf16>, vector<2x256xf32> -> vector<2x256xf32>
    %294 = arith.addf %269, %267 : vector<2x128xf32>
    %295 = vector.broadcast %4 : vector<1x128xf32> to vector<2x128xf32>
    %296 = arith.addf %294, %295 : vector<2x128xf32>
    %297 = vector.extract_strided_slice %296 {offsets = [0, 0], sizes = [2, 96], strides = [1, 1]} : vector<2x128xf32> to vector<2x96xf32>
    %298 = arith.negf %297 : vector<2x96xf32>
    %299 = math.exp %298 : vector<2x96xf32>
    %cst_58 = arith.constant 1.000000e+00 : f32
    %300 = vector.broadcast %cst_58 : f32 to vector<2x96xf32>
    %301 = arith.addf %300, %299 : vector<2x96xf32>
    %302 = arith.divf %300, %301 : vector<2x96xf32>
    %303 = vector.extract_strided_slice %296 {offsets = [0, 96], sizes = [2, 32], strides = [1, 1]} : vector<2x128xf32> to vector<2x32xf32>
    %304 = math.tanh %303 : vector<2x32xf32>
    %305 = vector.extract_strided_slice %302 {offsets = [0, 0], sizes = [2, 32], strides = [1, 1]} : vector<2x96xf32> to vector<2x32xf32>
    %306 = vector.extract_strided_slice %302 {offsets = [0, 32], sizes = [2, 32], strides = [1, 1]} : vector<2x96xf32> to vector<2x32xf32>
    %307 = vector.extract_strided_slice %302 {offsets = [0, 64], sizes = [2, 32], strides = [1, 1]} : vector<2x96xf32> to vector<2x32xf32>
    %308 = arith.mulf %306, %263 : vector<2x32xf32>
    %309 = arith.mulf %305, %304 : vector<2x32xf32>
    %310 = arith.addf %308, %309 : vector<2x32xf32>
    %311 = math.tanh %310 : vector<2x32xf32>
    %312 = arith.mulf %307, %311 : vector<2x32xf32>
    %313 = arith.truncf %312 : vector<2x32xf32> to vector<2x32xbf16>
    %cst_59 = arith.constant dense<0.000000e+00> : vector<2x128xf32>
    %314 = tpu.matmul %313, %2, %cst_59 {dimension_numbers = #tpu.dot_dimension_numbers<[1], [0], [0], [1], [0, 0, 1, 1], [], []>} : vector<2x32xbf16>, vector<32x128xbf16>, vector<2x128xf32> -> vector<2x128xf32>
    %315 = vector.extract_strided_slice %293 {offsets = [0, 0], sizes = [2, 128], strides = [1, 1]} : vector<2x256xf32> to vector<2x128xf32>
    %316 = vector.extract_strided_slice %293 {offsets = [0, 128], sizes = [2, 128], strides = [1, 1]} : vector<2x256xf32> to vector<2x128xf32>
    %c7 = arith.constant 7 : index
    %c0_60 = arith.constant 0 : index
    %c0_61 = arith.constant 0 : index
    %317 = vector.load %arg0[%c7, %c0_60, %c0_61] : memref<8x2x16xbf16, #tpu.memory_space<vmem>>, vector<1x2x16xbf16>
    %318 = vector.shape_cast %317 : vector<1x2x16xbf16> to vector<2x16xbf16>
    %cst_62 = arith.constant dense<0.000000e+00> : vector<2x128xf32>
    %319 = tpu.matmul %318, %0, %cst_62 {dimension_numbers = #tpu.dot_dimension_numbers<[1], [0], [0], [1], [0, 0, 1, 1], [], []>} : vector<2x16xbf16>, vector<16x128xbf16>, vector<2x128xf32> -> vector<2x128xf32>
    %320 = arith.addf %319, %315 : vector<2x128xf32>
    %321 = vector.broadcast %3 : vector<1x128xf32> to vector<2x128xf32>
    %322 = arith.addf %320, %321 : vector<2x128xf32>
    %323 = vector.extract_strided_slice %322 {offsets = [0, 0], sizes = [2, 96], strides = [1, 1]} : vector<2x128xf32> to vector<2x96xf32>
    %324 = arith.negf %323 : vector<2x96xf32>
    %325 = math.exp %324 : vector<2x96xf32>
    %cst_63 = arith.constant 1.000000e+00 : f32
    %326 = vector.broadcast %cst_63 : f32 to vector<2x96xf32>
    %327 = arith.addf %326, %325 : vector<2x96xf32>
    %328 = arith.divf %326, %327 : vector<2x96xf32>
    %329 = vector.extract_strided_slice %322 {offsets = [0, 96], sizes = [2, 32], strides = [1, 1]} : vector<2x128xf32> to vector<2x32xf32>
    %330 = math.tanh %329 : vector<2x32xf32>
    %331 = vector.extract_strided_slice %328 {offsets = [0, 0], sizes = [2, 32], strides = [1, 1]} : vector<2x96xf32> to vector<2x32xf32>
    %332 = vector.extract_strided_slice %328 {offsets = [0, 32], sizes = [2, 32], strides = [1, 1]} : vector<2x96xf32> to vector<2x32xf32>
    %333 = vector.extract_strided_slice %328 {offsets = [0, 64], sizes = [2, 32], strides = [1, 1]} : vector<2x96xf32> to vector<2x32xf32>
    %334 = arith.mulf %332, %289 : vector<2x32xf32>
    %335 = arith.mulf %331, %330 : vector<2x32xf32>
    %336 = arith.addf %334, %335 : vector<2x32xf32>
    %337 = math.tanh %336 : vector<2x32xf32>
    %338 = arith.mulf %333, %337 : vector<2x32xf32>
    %339 = arith.truncf %338 : vector<2x32xf32> to vector<2x32xbf16>
    %cst_64 = arith.constant dense<0.000000e+00> : vector<2x256xf32>
    %340 = tpu.matmul %339, %1, %cst_64 {dimension_numbers = #tpu.dot_dimension_numbers<[1], [0], [0], [1], [0, 0, 1, 1], [], []>} : vector<2x32xbf16>, vector<32x256xbf16>, vector<2x256xf32> -> vector<2x256xf32>
    %341 = arith.addf %316, %314 : vector<2x128xf32>
    %342 = vector.broadcast %4 : vector<1x128xf32> to vector<2x128xf32>
    %343 = arith.addf %341, %342 : vector<2x128xf32>
    %344 = vector.extract_strided_slice %343 {offsets = [0, 0], sizes = [2, 96], strides = [1, 1]} : vector<2x128xf32> to vector<2x96xf32>
    %345 = arith.negf %344 : vector<2x96xf32>
    %346 = math.exp %345 : vector<2x96xf32>
    %cst_65 = arith.constant 1.000000e+00 : f32
    %347 = vector.broadcast %cst_65 : f32 to vector<2x96xf32>
    %348 = arith.addf %347, %346 : vector<2x96xf32>
    %349 = arith.divf %347, %348 : vector<2x96xf32>
    %350 = vector.extract_strided_slice %343 {offsets = [0, 96], sizes = [2, 32], strides = [1, 1]} : vector<2x128xf32> to vector<2x32xf32>
    %351 = math.tanh %350 : vector<2x32xf32>
    %352 = vector.extract_strided_slice %349 {offsets = [0, 0], sizes = [2, 32], strides = [1, 1]} : vector<2x96xf32> to vector<2x32xf32>
    %353 = vector.extract_strided_slice %349 {offsets = [0, 32], sizes = [2, 32], strides = [1, 1]} : vector<2x96xf32> to vector<2x32xf32>
    %354 = vector.extract_strided_slice %349 {offsets = [0, 64], sizes = [2, 32], strides = [1, 1]} : vector<2x96xf32> to vector<2x32xf32>
    %355 = arith.mulf %353, %310 : vector<2x32xf32>
    %356 = arith.mulf %352, %351 : vector<2x32xf32>
    %357 = arith.addf %355, %356 : vector<2x32xf32>
    %358 = math.tanh %357 : vector<2x32xf32>
    %359 = arith.mulf %354, %358 : vector<2x32xf32>
    %360 = arith.truncf %359 : vector<2x32xf32> to vector<2x32xbf16>
    %cst_66 = arith.constant dense<0.000000e+00> : vector<2x128xf32>
    %361 = tpu.matmul %360, %2, %cst_66 {dimension_numbers = #tpu.dot_dimension_numbers<[1], [0], [0], [1], [0, 0, 1, 1], [], []>} : vector<2x32xbf16>, vector<32x128xbf16>, vector<2x128xf32> -> vector<2x128xf32>
    %362 = vector.extract_strided_slice %340 {offsets = [0, 128], sizes = [2, 128], strides = [1, 1]} : vector<2x256xf32> to vector<2x128xf32>
    %363 = arith.addf %362, %361 : vector<2x128xf32>
    %364 = vector.broadcast %4 : vector<1x128xf32> to vector<2x128xf32>
    %365 = arith.addf %363, %364 : vector<2x128xf32>
    %366 = vector.extract_strided_slice %365 {offsets = [0, 0], sizes = [2, 96], strides = [1, 1]} : vector<2x128xf32> to vector<2x96xf32>
    %367 = arith.negf %366 : vector<2x96xf32>
    %368 = math.exp %367 : vector<2x96xf32>
    %cst_67 = arith.constant 1.000000e+00 : f32
    %369 = vector.broadcast %cst_67 : f32 to vector<2x96xf32>
    %370 = arith.addf %369, %368 : vector<2x96xf32>
    %371 = arith.divf %369, %370 : vector<2x96xf32>
    %372 = vector.extract_strided_slice %365 {offsets = [0, 96], sizes = [2, 32], strides = [1, 1]} : vector<2x128xf32> to vector<2x32xf32>
    %373 = math.tanh %372 : vector<2x32xf32>
    %374 = vector.extract_strided_slice %371 {offsets = [0, 0], sizes = [2, 32], strides = [1, 1]} : vector<2x96xf32> to vector<2x32xf32>
    %375 = vector.extract_strided_slice %371 {offsets = [0, 32], sizes = [2, 32], strides = [1, 1]} : vector<2x96xf32> to vector<2x32xf32>
    %376 = vector.extract_strided_slice %371 {offsets = [0, 64], sizes = [2, 32], strides = [1, 1]} : vector<2x96xf32> to vector<2x32xf32>
    %377 = arith.mulf %375, %357 : vector<2x32xf32>
    %378 = arith.mulf %374, %373 : vector<2x32xf32>
    %379 = arith.addf %377, %378 : vector<2x32xf32>
    %380 = math.tanh %379 : vector<2x32xf32>
    %381 = arith.mulf %376, %380 : vector<2x32xf32>
    %382 = arith.truncf %381 : vector<2x32xf32> to vector<2x32xbf16>
    %c0_68 = arith.constant 0 : index
    %c0_69 = arith.constant 0 : index
    %383 = vector.load %arg6[%c0_68, %c0_69] : memref<32x4xbf16, #tpu.memory_space<vmem>>, vector<32x4xbf16>
    %cst_70 = arith.constant dense<0.000000e+00> : vector<2x4xf32>
    %384 = tpu.matmul %382, %383, %cst_70 {dimension_numbers = #tpu.dot_dimension_numbers<[1], [0], [0], [1], [0, 0, 1, 1], [], []>} : vector<2x32xbf16>, vector<32x4xbf16>, vector<2x4xf32> -> vector<2x4xf32>
    %c0_71 = arith.constant 0 : index
    %c0_72 = arith.constant 0 : index
    %385 = vector.load %arg7[%c0_71, %c0_72] : memref<1x4xf32, #tpu.memory_space<vmem>>, vector<1x4xf32>
    %386 = vector.broadcast %385 : vector<1x4xf32> to vector<2x4xf32>
    %387 = arith.addf %384, %386 : vector<2x4xf32>
    %c0_73 = arith.constant 0 : index
    %c0_74 = arith.constant 0 : index
    %388 = vector.load %arg8[%c0_73, %c0_74] : memref<2x4xf32, #tpu.memory_space<vmem>>, vector<2x4xf32>
    tpu.vector_store %arg8[%c0_73, %c0_74], %387 {strides = array<i32>} : memref<2x4xf32, #tpu.memory_space<vmem>>, vector<2x4xf32>,
    return
  }
}

</mosaic_0001>

<llo_original>
// kernel: lstm_model_forward.1
$region0: #{lstm_model_forward.1}
  #allocation0 [shape = 'u32[]', space=smem, size = 0x4, offset = 0x4, fixed_abs, tag = 'smem constant byte address 0x4 - core index']
  #allocation1 [shape = 'u32[144,128]{1,0:T(1,128)}', space=vmem, size = 0x12000, scoped, tag = 'internal scratch']
  %s0 = inlined_call_operand.vmem [shape: bf16[8,2,16], index: 0, kind: input, shape index: {}]
  %s1 = inlined_call_operand.vmem [shape: bf16[16,128], index: 1, kind: input, shape index: {}]
  %s2 = inlined_call_operand.vmem [shape: bf16[32,256], index: 2, kind: input, shape index: {}]
  %s3 = inlined_call_operand.vmem [shape: f32[1,128], index: 3, kind: input, shape index: {}]
  %s4 = inlined_call_operand.vmem [shape: bf16[32,128], index: 4, kind: input, shape index: {}]
  %s5 = inlined_call_operand.vmem [shape: f32[1,128], index: 5, kind: input, shape index: {}]
  %s6 = inlined_call_operand.vmem [shape: bf16[32,4], index: 6, kind: input, shape index: {}]
  %s7 = inlined_call_operand.vmem [shape: f32[1,4], index: 7, kind: input, shape index: {}]
  %s8 = inlined_call_operand.hbm [shape: f32[2,4], index: 8, kind: output, shape index: {}]
  %s9 = sld [smem:[#allocation0]]
  $region42: #{lstm_model_forward.1} parent=0
    _
  %s11 = ssub.s32 1, %s9
  %s12 = scalar_select 0, %s11, %s9
  $region1: #{lstm_model_forward.1} parent=0
    #allocation2 [shape = 'u8[1024]{0}', space=vmem, size = 0x400, scoped, tag = 'output window, operand 0, single buffered']
    #allocation3 [shape = 's32[1]{0}', space=sflag, size = 0x4, scoped, tag = 'scoped memory for lstm_model_forward.1']
    %13 = vsyncpa [#allocation3], 0
    // Predicated region
    $region2: #{lstm_model_forward.1} parent=1 // pred_check
      _
    $region3: #{lstm_model_forward.1} parent=1 // pred_check_branch
      %15 = sbr.rel (0) target = $region5
    $region4: #{lstm_model_forward.1} parent=1 // pred_region
      _
    $region5: #{lstm_model_forward.1} parent=1 // pred_fallthru
      _
    // Predicated region
    $region6: #{lstm_model_forward.1} parent=1 // pred_check
      _
    $region7: #{lstm_model_forward.1} parent=1 // pred_check_branch
      %17 = sbr.rel (0) target = $region9
    $region8: #{lstm_model_forward.1} parent=1 // pred_region
      _
    $region9: #{lstm_model_forward.1} parent=1 // pred_fallthru
      _
    // Predicated region
    $region10: #{lstm_model_forward.1} parent=1 // pred_check
      _
    $region11: #{lstm_model_forward.1} parent=1 // pred_check_branch
      %19 = sbr.rel (0) target = $region13
    $region12: #{lstm_model_forward.1} parent=1 // pred_region
      _
    $region13: #{lstm_model_forward.1} parent=1 // pred_fallthru
      _
    // Predicated region
    $region14: #{lstm_model_forward.1} parent=1 // pred_check
      _
    $region15: #{lstm_model_forward.1} parent=1 // pred_check_branch
      %21 = sbr.rel (0) target = $region17
    $region16: #{lstm_model_forward.1} parent=1 // pred_region
      _
    $region17: #{lstm_model_forward.1} parent=1 // pred_fallthru
      _
    // Predicated region
    $region18: #{lstm_model_forward.1} parent=1 // pred_check
      _
    $region19: #{lstm_model_forward.1} parent=1 // pred_check_branch
      %23 = sbr.rel (0) target = $region21
    $region20: #{lstm_model_forward.1} parent=1 // pred_region
      _
    $region21: #{lstm_model_forward.1} parent=1 // pred_fallthru
      _
    // Predicated region
    $region22: #{lstm_model_forward.1} parent=1 // pred_check
      _
    $region23: #{lstm_model_forward.1} parent=1 // pred_check_branch
      %25 = sbr.rel (0) target = $region25
    $region24: #{lstm_model_forward.1} parent=1 // pred_region
      _
    $region25: #{lstm_model_forward.1} parent=1 // pred_fallthru
      _
    // Predicated region
    $region26: #{lstm_model_forward.1} parent=1 // pred_check
      _
    $region27: #{lstm_model_forward.1} parent=1 // pred_check_branch
      %27 = sbr.rel (0) target = $region29
    $region28: #{lstm_model_forward.1} parent=1 // pred_region
      _
    $region29: #{lstm_model_forward.1} parent=1 // pred_fallthru
      _
    // Predicated region
    $region30: #{lstm_model_forward.1} parent=1 // pred_check
      _
    $region31: #{lstm_model_forward.1} parent=1 // pred_check_branch
      %29 = sbr.rel (0) target = $region33
    $region32: #{lstm_model_forward.1} parent=1 // pred_region
      _
    $region33: #{lstm_model_forward.1} parent=1 // pred_fallthru
      _
    %v31 = vld [vmem:[%s1] sm:$0xf]
    %v32 = vld [vmem:[%s1 + $0x4] sm:$0xf]
    %v33 = vld [vmem:[%s2] sm:$0xff]
    %v34 = vld [vmem:[%s2 + $0x8] sm:$0xff]
    %v35 = vld [vmem:[%s2 + $0x10] sm:$0xff]
    %v36 = vld [vmem:[%s2 + $0x18] sm:$0xff]
    %v37 = vld [vmem:[%s4] sm:$0xf]
    %v38 = vld [vmem:[%s4 + $0x4] sm:$0xf]
    %v39 = vld [vmem:[%s4 + $0x8] sm:$0xf]
    %v40 = vld [vmem:[%s4 + $0xc] sm:$0xf]
    %v41 = vld [vmem:[%s3] sm:$0x1]
    %v42 = vld [vmem:[%s5] sm:$0x1]
    %v43 = vld [vmem:[%s0] sm:$0x1]
    %v45 = vlaneseq
    %v46 = vshrl.u32 %v45, 7
    %v47 = vsub.s32 0, %v46
    %v48 = vrot.slane %v41, %v47
    %v52 = vunpack.c.l.b16 %v31
    %v53 = vunpack.c.l.b16 %v32
    %v54 = vpack.c.b16 %v53, %v52
    %vm56 = vcmask 130048
    %v58 = vsel %vm56, %v43, 0
    %60 = vmatprep.subr.bf16.mxu0 0
    %61 = vmatpush1.bf16.msra.mxu0 0
    %62 = vmatprep.subr.bf16.mxu0 0
    %63 = vmatpush1.bf16.msra.mxu0 0
    %64 = vmatprep.subr.bf16.mxu0 0
    %65 = vmatpush1.bf16.msra.mxu0 0
    %66 = vmatprep.subr.bf16.mxu0 0
    %67 = vmatpush1.bf16.msra.mxu0 0
    %68 = vmatprep.subr.bf16.mxu0 0
    %69 = vmatpush1.bf16.msra.mxu0 0
    %70 = vmatprep.subr.bf16.mxu0 0
    %71 = vmatpush1.bf16.msra.mxu0 0
    %72 = vmatprep.subr.bf16.mxu0 0
    %73 = vmatpush1.bf16.msra.mxu0 0
    %74 = vmatprep.subr.bf16.mxu0 0
    %75 = vmatpush1.bf16.msra.mxu0 %v54
    %76 = vmatprep.subr.bf16.mxu0 0
    %77 = vmatpush2.bf16.msra.mxu0 0
    %78 = vmatprep.subr.bf16.mxu0 0
    %79 = vmatpush2.bf16.msra.mxu0 0
    %80 = vmatprep.subr.bf16.mxu0 0
    %81 = vmatpush2.bf16.msra.mxu0 0
    %82 = vmatprep.subr.bf16.mxu0 0
    %83 = vmatpush2.bf16.msra.mxu0 0
    %84 = vmatprep.subr.bf16.mxu0 0
    %85 = vmatpush2.bf16.msra.mxu0 0
    %86 = vmatprep.subr.bf16.mxu0 0
    %87 = vmatpush2.bf16.msra.mxu0 0
    %88 = vmatprep.subr.bf16.mxu0 0
    %89 = vmatpush2.bf16.msra.mxu0 0
    %90 = vmatprep.subr.bf16.mxu0 0
    %91 = vmatpush2.bf16.msra.mxu0 0
    %92 = vmatprep.mubr.bf16.mxu0 0
    %93 = vmatmul.mubr.bf16.gmra.mxu0 %v58
    %v94 = vpop.f32.mrf.mxu0
    %v95 = vadd.f32 %v48, %v94
    %v96 = vpop.f32.mrf.mxu0
    %v97 = vpop.f32.mrf.mxu0
    %v98 = vpop.f32.mrf.mxu0
    %99 = vdwg.mxu0
    %v100 = vxor.u32 %v95, 2147483648
    %v101 = vmul.f32 %v100, 1.442695
    %v102 = vpow.pop %v101
    %v103 = vadd.f32 %v102, 1.0
    %v104 = vrcp.pop %v103
    %v105 = vmul.f32 1.0, %v104
    %v106 = vtanh.pop %v95
    %v107 = vmul.f32 %v105, 0.0
    %109 = vrot.lane.b32.xlu0 %v106, 32
    %v110 = vpop.permute.xlu0 %109
    %v112 = vmul.f32 %v105, %v110
    %114 = vrot.lane.b32.xlu0 %v112, 32
    %v115 = vpop.permute.xlu0 %114
    %v117 = vadd.f32 %v107, %v115
    %v118 = vtanh.pop %v117
    %120 = vrot.lane.b32.xlu0 %v118, 32
    %v121 = vpop.permute.xlu0 %120
    %v123 = vmul.f32 %v105, %v121
    %v124 = vpack.c.bf16 %v123, %v123
    %126 = vrot.lane.b32.xlu0 %v124, 64
    %v127 = vpop.permute.xlu0 %126
    %v132 = vunpack.c.l.b16 %v33
    %v133 = vunpack.c.h.b16 %v33
    %v134 = vunpack.c.l.b16 %v34
    %v135 = vunpack.c.h.b16 %v34
    %v136 = vunpack.c.l.b16 %v35
    %v137 = vunpack.c.h.b16 %v35
    %v138 = vunpack.c.l.b16 %v36
    %v139 = vunpack.c.h.b16 %v36
    %v140 = vpack.c.b16 %v134, %v132
    %v141 = vpack.c.b16 %v135, %v133
    %v142 = vpack.c.b16 %v138, %v136
    %v143 = vpack.c.b16 %v139, %v137
    %vm148 = vcmask 261120
    %v150 = vsel %vm148, %v127, 0
    %152 = vmatprep.subr.bf16.mxu0 0
    %153 = vmatpush1.bf16.msra.mxu0 0
    %154 = vmatprep.subr.bf16.mxu0 0
    %155 = vmatpush1.bf16.msra.mxu0 0
    %156 = vmatprep.subr.bf16.mxu0 0
    %157 = vmatpush1.bf16.msra.mxu0 0
    %158 = vmatprep.subr.bf16.mxu0 0
    %159 = vmatpush1.bf16.msra.mxu0 0
    %160 = vmatprep.subr.bf16.mxu0 0
    %161 = vmatpush1.bf16.msra.mxu0 0
    %162 = vmatprep.subr.bf16.mxu0 0
    %163 = vmatpush1.bf16.msra.mxu0 0
    %164 = vmatprep.subr.bf16.mxu0 %v143
    %165 = vmatpush1.bf16.msra.mxu0 %v142
    %166 = vmatprep.subr.bf16.mxu0 %v141
    %167 = vmatpush1.bf16.msra.mxu0 %v140
    %168 = vmatprep.subr.bf16.mxu0 0
    %169 = vmatpush2.bf16.msra.mxu0 0
    %170 = vmatprep.subr.bf16.mxu0 0
    %171 = vmatpush2.bf16.msra.mxu0 0
    %172 = vmatprep.subr.bf16.mxu0 0
    %173 = vmatpush2.bf16.msra.mxu0 0
    %174 = vmatprep.subr.bf16.mxu0 0
    %175 = vmatpush2.bf16.msra.mxu0 0
    %176 = vmatprep.subr.bf16.mxu0 0
    %177 = vmatpush2.bf16.msra.mxu0 0
    %178 = vmatprep.subr.bf16.mxu0 0
    %179 = vmatpush2.bf16.msra.mxu0 0
    %180 = vmatprep.subr.bf16.mxu0 0
    %181 = vmatpush2.bf16.msra.mxu0 0
    %182 = vmatprep.subr.bf16.mxu0 0
    %183 = vmatpush2.bf16.msra.mxu0 0
    %184 = vmatprep.mubr.bf16.mxu0 0
    %185 = vmatmul.mubr.bf16.gmra.mxu0 %v150
    %v186 = vpop.f32.mrf.mxu0
    %v187 = vadd.f32 0.0, %v186
    %v188 = vpop.f32.mrf.mxu0
    %v189 = vadd.f32 0.0, %v188
    %v190 = vpop.f32.mrf.mxu0
    %v191 = vpop.f32.mrf.mxu0
    %192 = vdwg.mxu0
    %s193 = scalar_lea.vmem %s0, 1
    %v194 = vld [vmem:[%s193] sm:$0x1]
    %v196 = vsel %vm56, %v194, 0
    %198 = vmatprep.subr.bf16.mxu0 0
    %199 = vmatpush1.bf16.msra.mxu0 0
    %200 = vmatprep.subr.bf16.mxu0 0
    %201 = vmatpush1.bf16.msra.mxu0 0
    %202 = vmatprep.subr.bf16.mxu0 0
    %203 = vmatpush1.bf16.msra.mxu0 0
    %204 = vmatprep.subr.bf16.mxu0 0
    %205 = vmatpush1.bf16.msra.mxu0 0
    %206 = vmatprep.subr.bf16.mxu0 0
    %207 = vmatpush1.bf16.msra.mxu0 0
    %208 = vmatprep.subr.bf16.mxu0 0
    %209 = vmatpush1.bf16.msra.mxu0 0
    %210 = vmatprep.subr.bf16.mxu0 0
    %211 = vmatpush1.bf16.msra.mxu0 0
    %212 = vmatprep.subr.bf16.mxu0 0
    %213 = vmatpush1.bf16.msra.mxu0 %v54
    %214 = vmatprep.subr.bf16.mxu0 0
    %215 = vmatpush2.bf16.msra.mxu0 0
    %216 = vmatprep.subr.bf16.mxu0 0
    %217 = vmatpush2.bf16.msra.mxu0 0
    %218 = vmatprep.subr.bf16.mxu0 0
    %219 = vmatpush2.bf16.msra.mxu0 0
    %220 = vmatprep.subr.bf16.mxu0 0
    %221 = vmatpush2.bf16.msra.mxu0 0
    %222 = vmatprep.subr.bf16.mxu0 0
    %223 = vmatpush2.bf16.msra.mxu0 0
    %224 = vmatprep.subr.bf16.mxu0 0
    %225 = vmatpush2.bf16.msra.mxu0 0
    %226 = vmatprep.subr.bf16.mxu0 0
    %227 = vmatpush2.bf16.msra.mxu0 0
    %228 = vmatprep.subr.bf16.mxu0 0
    %229 = vmatpush2.bf16.msra.mxu0 0
    %230 = vmatprep.mubr.bf16.mxu0 0
    %231 = vmatmul.mubr.bf16.gmra.mxu0 %v196
    %v232 = vpop.f32.mrf.mxu0
    %v233 = vadd.f32 %v187, %v232
    %v234 = vpop.f32.mrf.mxu0
    %v235 = vpop.f32.mrf.mxu0
    %v236 = vpop.f32.mrf.mxu0
    %237 = vdwg.mxu0
    %v238 = vadd.f32 %v233, %v48
    %v239 = vxor.u32 %v238, 2147483648
    %v240 = vmul.f32 %v239, 1.442695
    %v241 = vpow.pop %v240
    %v242 = vadd.f32 %v241, 1.0
    %v243 = vrcp.pop %v242
    %v244 = vmul.f32 1.0, %v243
    %v245 = vtanh.pop %v238
    %v246 = vmul.f32 %v244, %v117
    %248 = vrot.lane.b32.xlu0 %v245, 32
    %v249 = vpop.permute.xlu0 %248
    %v251 = vmul.f32 %v244, %v249
    %253 = vrot.lane.b32.xlu0 %v251, 32
    %v254 = vpop.permute.xlu0 %253
    %v256 = vadd.f32 %v246, %v254
    %v257 = vtanh.pop %v256
    %259 = vrot.lane.b32.xlu0 %v257, 32
    %v260 = vpop.permute.xlu0 %259
    %v262 = vmul.f32 %v244, %v260
    %v263 = vpack.c.bf16 %v262, %v262
    %265 = vrot.lane.b32.xlu0 %v263, 64
    %v266 = vpop.permute.xlu0 %265
    %v268 = vsel %vm148, %v266, 0
    %270 = vmatprep.subr.bf16.mxu0 0
    %271 = vmatpush1.bf16.msra.mxu0 0
    %272 = vmatprep.subr.bf16.mxu0 0
    %273 = vmatpush1.bf16.msra.mxu0 0
    %274 = vmatprep.subr.bf16.mxu0 0
    %275 = vmatpush1.bf16.msra.mxu0 0
    %276 = vmatprep.subr.bf16.mxu0 0
    %277 = vmatpush1.bf16.msra.mxu0 0
    %278 = vmatprep.subr.bf16.mxu0 0
    %279 = vmatpush1.bf16.msra.mxu0 0
    %280 = vmatprep.subr.bf16.mxu0 0
    %281 = vmatpush1.bf16.msra.mxu0 0
    %282 = vmatprep.subr.bf16.mxu0 %v143
    %283 = vmatpush1.bf16.msra.mxu0 %v142
    %284 = vmatprep.subr.bf16.mxu0 %v141
    %285 = vmatpush1.bf16.msra.mxu0 %v140
    %286 = vmatprep.subr.bf16.mxu0 0
    %287 = vmatpush2.bf16.msra.mxu0 0
    %288 = vmatprep.subr.bf16.mxu0 0
    %289 = vmatpush2.bf16.msra.mxu0 0
    %290 = vmatprep.subr.bf16.mxu0 0
    %291 = vmatpush2.bf16.msra.mxu0 0
    %292 = vmatprep.subr.bf16.mxu0 0
    %293 = vmatpush2.bf16.msra.mxu0 0
    %294 = vmatprep.subr.bf16.mxu0 0
    %295 = vmatpush2.bf16.msra.mxu0 0
    %296 = vmatprep.subr.bf16.mxu0 0
    %297 = vmatpush2.bf16.msra.mxu0 0
    %298 = vmatprep.subr.bf16.mxu0 0
    %299 = vmatpush2.bf16.msra.mxu0 0
    %300 = vmatprep.subr.bf16.mxu0 0
    %301 = vmatpush2.bf16.msra.mxu0 0
    %302 = vmatprep.mubr.bf16.mxu0 0
    %303 = vmatmul.mubr.bf16.gmra.mxu0 %v268
    %v304 = vpop.f32.mrf.mxu0
    %v305 = vadd.f32 0.0, %v304
    %v306 = vpop.f32.mrf.mxu0
    %v307 = vadd.f32 0.0, %v306
    %v308 = vpop.f32.mrf.mxu0
    %v309 = vpop.f32.mrf.mxu0
    %310 = vdwg.mxu0
    %v311 = vadd.f32 %v189, 0.0
    %v313 = vlaneseq
    %v314 = vshrl.u32 %v313, 7
    %v315 = vsub.s32 0, %v314
    %v316 = vrot.slane %v42, %v315
    %v318 = vadd.f32 %v311, %v316
    %v319 = vxor.u32 %v318, 2147483648
    %v320 = vmul.f32 %v319, 1.442695
    %v321 = vpow.pop %v320
    %v322 = vadd.f32 %v321, 1.0
    %v323 = vrcp.pop %v322
    %v324 = vmul.f32 1.0, %v323
    %v325 = vtanh.pop %v318
    %v326 = vmul.f32 %v324, 0.0
    %328 = vrot.lane.b32.xlu0 %v325, 32
    %v329 = vpop.permute.xlu0 %328
    %v331 = vmul.f32 %v324, %v329
    %333 = vrot.lane.b32.xlu0 %v331, 32
    %v334 = vpop.permute.xlu0 %333
    %v336 = vadd.f32 %v326, %v334
    %v337 = vtanh.pop %v336
    %339 = vrot.lane.b32.xlu0 %v337, 32
    %v340 = vpop.permute.xlu0 %339
    %v342 = vmul.f32 %v324, %v340
    %v343 = vpack.c.bf16 %v342, %v342
    %345 = vrot.lane.b32.xlu0 %v343, 64
    %v346 = vpop.permute.xlu0 %345
    %v351 = vunpack.c.l.b16 %v37
    %v352 = vunpack.c.l.b16 %v38
    %v353 = vunpack.c.l.b16 %v39
    %v354 = vunpack.c.l.b16 %v40
    %v355 = vpack.c.b16 %v352, %v351
    %v356 = vpack.c.b16 %v354, %v353
    %v360 = vsel %vm148, %v346, 0
    %362 = vmatprep.subr.bf16.mxu0 0
    %363 = vmatpush1.bf16.msra.mxu0 0
    %364 = vmatprep.subr.bf16.mxu0 0
    %365 = vmatpush1.bf16.msra.mxu0 0
    %366 = vmatprep.subr.bf16.mxu0 0
    %367 = vmatpush1.bf16.msra.mxu0 0
    %368 = vmatprep.subr.bf16.mxu0 0
    %369 = vmatpush1.bf16.msra.mxu0 0
    %370 = vmatprep.subr.bf16.mxu0 0
    %371 = vmatpush1.bf16.msra.mxu0 0
    %372 = vmatprep.subr.bf16.mxu0 0
    %373 = vmatpush1.bf16.msra.mxu0 0
    %374 = vmatprep.subr.bf16.mxu0 0
    %375 = vmatpush1.bf16.msra.mxu0 %v356
    %376 = vmatprep.subr.bf16.mxu0 0
    %377 = vmatpush1.bf16.msra.mxu0 %v355
    %378 = vmatprep.subr.bf16.mxu0 0
    %379 = vmatpush2.bf16.msra.mxu0 0
    %380 = vmatprep.subr.bf16.mxu0 0
    %381 = vmatpush2.bf16.msra.mxu0 0
    %382 = vmatprep.subr.bf16.mxu0 0
    %383 = vmatpush2.bf16.msra.mxu0 0
    %384 = vmatprep.subr.bf16.mxu0 0
    %385 = vmatpush2.bf16.msra.mxu0 0
    %386 = vmatprep.subr.bf16.mxu0 0
    %387 = vmatpush2.bf16.msra.mxu0 0
    %388 = vmatprep.subr.bf16.mxu0 0
    %389 = vmatpush2.bf16.msra.mxu0 0
    %390 = vmatprep.subr.bf16.mxu0 0
    %391 = vmatpush2.bf16.msra.mxu0 0
    %392 = vmatprep.subr.bf16.mxu0 0
    %393 = vmatpush2.bf16.msra.mxu0 0
    %394 = vmatprep.mubr.bf16.mxu0 0
    %395 = vmatmul.mubr.bf16.gmra.mxu0 %v360
    %v396 = vpop.f32.mrf.mxu0
    %v397 = vadd.f32 0.0, %v396
    %v398 = vpop.f32.mrf.mxu0
    %v399 = vpop.f32.mrf.mxu0
    %v400 = vpop.f32.mrf.mxu0
    %401 = vdwg.mxu0
    %s402 = scalar_lea.vmem %s0, 2
    %v403 = vld [vmem:[%s402] sm:$0x1]
    %v405 = vsel %vm56, %v403, 0
    %407 = vmatprep.subr.bf16.mxu0 0
    %408 = vmatpush1.bf16.msra.mxu0 0
    %409 = vmatprep.subr.bf16.mxu0 0
    %410 = vmatpush1.bf16.msra.mxu0 0
    %411 = vmatprep.subr.bf16.mxu0 0
    %412 = vmatpush1.bf16.msra.mxu0 0
    %413 = vmatprep.subr.bf16.mxu0 0
    %414 = vmatpush1.bf16.msra.mxu0 0
    %415 = vmatprep.subr.bf16.mxu0 0
    %416 = vmatpush1.bf16.msra.mxu0 0
    %417 = vmatprep.subr.bf16.mxu0 0
    %418 = vmatpush1.bf16.msra.mxu0 0
    %419 = vmatprep.subr.bf16.mxu0 0
    %420 = vmatpush1.bf16.msra.mxu0 0
    %421 = vmatprep.subr.bf16.mxu0 0
    %422 = vmatpush1.bf16.msra.mxu0 %v54
    %423 = vmatprep.subr.bf16.mxu0 0
    %424 = vmatpush2.bf16.msra.mxu0 0
    %425 = vmatprep.subr.bf16.mxu0 0
    %426 = vmatpush2.bf16.msra.mxu0 0
    %427 = vmatprep.subr.bf16.mxu0 0
    %428 = vmatpush2.bf16.msra.mxu0 0
    %429 = vmatprep.subr.bf16.mxu0 0
    %430 = vmatpush2.bf16.msra.mxu0 0
    %431 = vmatprep.subr.bf16.mxu0 0
    %432 = vmatpush2.bf16.msra.mxu0 0
    %433 = vmatprep.subr.bf16.mxu0 0
    %434 = vmatpush2.bf16.msra.mxu0 0
    %435 = vmatprep.subr.bf16.mxu0 0
    %436 = vmatpush2.bf16.msra.mxu0 0
    %437 = vmatprep.subr.bf16.mxu0 0
    %438 = vmatpush2.bf16.msra.mxu0 0
    %439 = vmatprep.mubr.bf16.mxu0 0
    %440 = vmatmul.mubr.bf16.gmra.mxu0 %v405
    %v441 = vpop.f32.mrf.mxu0
    %v442 = vadd.f32 %v305, %v441
    %v443 = vpop.f32.mrf.mxu0
    %v444 = vpop.f32.mrf.mxu0
    %v445 = vpop.f32.mrf.mxu0
    %446 = vdwg.mxu0
    %v447 = vadd.f32 %v442, %v48
    %v448 = vxor.u32 %v447, 2147483648
    %v449 = vmul.f32 %v448, 1.442695
    %v450 = vpow.pop %v449
    %v451 = vadd.f32 %v450, 1.0
    %v452 = vrcp.pop %v451
    %v453 = vmul.f32 1.0, %v452
    %v454 = vtanh.pop %v447
    %v455 = vmul.f32 %v453, %v256
    %457 = vrot.lane.b32.xlu0 %v454, 32
    %v458 = vpop.permute.xlu0 %457
    %v460 = vmul.f32 %v453, %v458
    %462 = vrot.lane.b32.xlu0 %v460, 32
    %v463 = vpop.permute.xlu0 %462
    %v465 = vadd.f32 %v455, %v463
    %v466 = vtanh.pop %v465
    %468 = vrot.lane.b32.xlu0 %v466, 32
    %v469 = vpop.permute.xlu0 %468
    %v471 = vmul.f32 %v453, %v469
    %v472 = vpack.c.bf16 %v471, %v471
    %474 = vrot.lane.b32.xlu0 %v472, 64
    %v475 = vpop.permute.xlu0 %474
    %v477 = vsel %vm148, %v475, 0
    %479 = vmatprep.subr.bf16.mxu0 0
    %480 = vmatpush1.bf16.msra.mxu0 0
    %481 = vmatprep.subr.bf16.mxu0 0
    %482 = vmatpush1.bf16.msra.mxu0 0
    %483 = vmatprep.subr.bf16.mxu0 0
    %484 = vmatpush1.bf16.msra.mxu0 0
    %485 = vmatprep.subr.bf16.mxu0 0
    %486 = vmatpush1.bf16.msra.mxu0 0
    %487 = vmatprep.subr.bf16.mxu0 0
    %488 = vmatpush1.bf16.msra.mxu0 0
    %489 = vmatprep.subr.bf16.mxu0 0
    %490 = vmatpush1.bf16.msra.mxu0 0
    %491 = vmatprep.subr.bf16.mxu0 %v143
    %492 = vmatpush1.bf16.msra.mxu0 %v142
    %493 = vmatprep.subr.bf16.mxu0 %v141
    %494 = vmatpush1.bf16.msra.mxu0 %v140
    %495 = vmatprep.subr.bf16.mxu0 0
    %496 = vmatpush2.bf16.msra.mxu0 0
    %497 = vmatprep.subr.bf16.mxu0 0
    %498 = vmatpush2.bf16.msra.mxu0 0
    %499 = vmatprep.subr.bf16.mxu0 0
    %500 = vmatpush2.bf16.msra.mxu0 0
    %501 = vmatprep.subr.bf16.mxu0 0
    %502 = vmatpush2.bf16.msra.mxu0 0
    %503 = vmatprep.subr.bf16.mxu0 0
    %504 = vmatpush2.bf16.msra.mxu0 0
    %505 = vmatprep.subr.bf16.mxu0 0
    %506 = vmatpush2.bf16.msra.mxu0 0
    %507 = vmatprep.subr.bf16.mxu0 0
    %508 = vmatpush2.bf16.msra.mxu0 0
    %509 = vmatprep.subr.bf16.mxu0 0
    %510 = vmatpush2.bf16.msra.mxu0 0
    %511 = vmatprep.mubr.bf16.mxu0 0
    %512 = vmatmul.mubr.bf16.gmra.mxu0 %v477
    %v513 = vpop.f32.mrf.mxu0
    %v514 = vadd.f32 0.0, %v513
    %v515 = vpop.f32.mrf.mxu0
    %v516 = vadd.f32 0.0, %v515
    %v517 = vpop.f32.mrf.mxu0
    %v518 = vpop.f32.mrf.mxu0
    %519 = vdwg.mxu0
    %v520 = vadd.f32 %v307, %v397
    %v521 = vadd.f32 %v520, %v316
    %v522 = vxor.u32 %v521, 2147483648
    %v523 = vmul.f32 %v522, 1.442695
    %v524 = vpow.pop %v523
    %v525 = vadd.f32 %v524, 1.0
    %v526 = vrcp.pop %v525
    %v527 = vmul.f32 1.0, %v526
    %v528 = vtanh.pop %v521
    %v529 = vmul.f32 %v527, %v336
    %531 = vrot.lane.b32.xlu0 %v528, 32
    %v532 = vpop.permute.xlu0 %531
    %v534 = vmul.f32 %v527, %v532
    %536 = vrot.lane.b32.xlu0 %v534, 32
    %v537 = vpop.permute.xlu0 %536
    %v539 = vadd.f32 %v529, %v537
    %v540 = vtanh.pop %v539
    %542 = vrot.lane.b32.xlu0 %v540, 32
    %v543 = vpop.permute.xlu0 %542
    %v545 = vmul.f32 %v527, %v543
    %v546 = vpack.c.bf16 %v545, %v545
    %548 = vrot.lane.b32.xlu0 %v546, 64
    %v549 = vpop.permute.xlu0 %548
    %v551 = vsel %vm148, %v549, 0
    %553 = vmatprep.subr.bf16.mxu0 0
    %554 = vmatpush1.bf16.msra.mxu0 0
    %555 = vmatprep.subr.bf16.mxu0 0
    %556 = vmatpush1.bf16.msra.mxu0 0
    %557 = vmatprep.subr.bf16.mxu0 0
    %558 = vmatpush1.bf16.msra.mxu0 0
    %559 = vmatprep.subr.bf16.mxu0 0
    %560 = vmatpush1.bf16.msra.mxu0 0
    %561 = vmatprep.subr.bf16.mxu0 0
    %562 = vmatpush1.bf16.msra.mxu0 0
    %563 = vmatprep.subr.bf16.mxu0 0
    %564 = vmatpush1.bf16.msra.mxu0 0
    %565 = vmatprep.subr.bf16.mxu0 0
    %566 = vmatpush1.bf16.msra.mxu0 %v356
    %567 = vmatprep.subr.bf16.mxu0 0
    %568 = vmatpush1.bf16.msra.mxu0 %v355
    %569 = vmatprep.subr.bf16.mxu0 0
    %570 = vmatpush2.bf16.msra.mxu0 0
    %571 = vmatprep.subr.bf16.mxu0 0
    %572 = vmatpush2.bf16.msra.mxu0 0
    %573 = vmatprep.subr.bf16.mxu0 0
    %574 = vmatpush2.bf16.msra.mxu0 0
    %575 = vmatprep.subr.bf16.mxu0 0
    %576 = vmatpush2.bf16.msra.mxu0 0
    %577 = vmatprep.subr.bf16.mxu0 0
    %578 = vmatpush2.bf16.msra.mxu0 0
    %579 = vmatprep.subr.bf16.mxu0 0
    %580 = vmatpush2.bf16.msra.mxu0 0
    %581 = vmatprep.subr.bf16.mxu0 0
    %582 = vmatpush2.bf16.msra.mxu0 0
    %583 = vmatprep.subr.bf16.mxu0 0
    %584 = vmatpush2.bf16.msra.mxu0 0
    %585 = vmatprep.mubr.bf16.mxu0 0
    %586 = vmatmul.mubr.bf16.gmra.mxu0 %v551
    %v587 = vpop.f32.mrf.mxu0
    %v588 = vadd.f32 0.0, %v587
    %v589 = vpop.f32.mrf.mxu0
    %v590 = vpop.f32.mrf.mxu0
    %v591 = vpop.f32.mrf.mxu0
    %592 = vdwg.mxu0
    %s593 = scalar_lea.vmem %s0, 3
    %v594 = vld [vmem:[%s593] sm:$0x1]
    %v596 = vsel %vm56, %v594, 0
    %598 = vmatprep.subr.bf16.mxu0 0
    %599 = vmatpush1.bf16.msra.mxu0 0
    %600 = vmatprep.subr.bf16.mxu0 0
    %601 = vmatpush1.bf16.msra.mxu0 0
    %602 = vmatprep.subr.bf16.mxu0 0
    %603 = vmatpush1.bf16.msra.mxu0 0
    %604 = vmatprep.subr.bf16.mxu0 0
    %605 = vmatpush1.bf16.msra.mxu0 0
    %606 = vmatprep.subr.bf16.mxu0 0
    %607 = vmatpush1.bf16.msra.mxu0 0
    %608 = vmatprep.subr.bf16.mxu0 0
    %609 = vmatpush1.bf16.msra.mxu0 0
    %610 = vmatprep.subr.bf16.mxu0 0
    %611 = vmatpush1.bf16.msra.mxu0 0
    %612 = vmatprep.subr.bf16.mxu0 0
    %613 = vmatpush1.bf16.msra.mxu0 %v54
    %614 = vmatprep.subr.bf16.mxu0 0
    %615 = vmatpush2.bf16.msra.mxu0 0
    %616 = vmatprep.subr.bf16.mxu0 0
    %617 = vmatpush2.bf16.msra.mxu0 0
    %618 = vmatprep.subr.bf16.mxu0 0
    %619 = vmatpush2.bf16.msra.mxu0 0
    %620 = vmatprep.subr.bf16.mxu0 0
    %621 = vmatpush2.bf16.msra.mxu0 0
    %622 = vmatprep.subr.bf16.mxu0 0
    %623 = vmatpush2.bf16.msra.mxu0 0
    %624 = vmatprep.subr.bf16.mxu0 0
    %625 = vmatpush2.bf16.msra.mxu0 0
    %626 = vmatprep.subr.bf16.mxu0 0
    %627 = vmatpush2.bf16.msra.mxu0 0
    %628 = vmatprep.subr.bf16.mxu0 0
    %629 = vmatpush2.bf16.msra.mxu0 0
    %630 = vmatprep.mubr.bf16.mxu0 0
    %631 = vmatmul.mubr.bf16.gmra.mxu0 %v596
    %v632 = vpop.f32.mrf.mxu0
    %v633 = vadd.f32 %v514, %v632
    %v634 = vpop.f32.mrf.mxu0
    %v635 = vpop.f32.mrf.mxu0
    %v636 = vpop.f32.mrf.mxu0
    %637 = vdwg.mxu0
    %v638 = vadd.f32 %v633, %v48
    %v639 = vxor.u32 %v638, 2147483648
    %v640 = vmul.f32 %v639, 1.442695
    %v641 = vpow.pop %v640
    %v642 = vadd.f32 %v641, 1.0
    %v643 = vrcp.pop %v642
    %v644 = vmul.f32 1.0, %v643
    %v645 = vtanh.pop %v638
    %v646 = vmul.f32 %v644, %v465
    %648 = vrot.lane.b32.xlu0 %v645, 32
    %v649 = vpop.permute.xlu0 %648
    %v651 = vmul.f32 %v644, %v649
    %653 = vrot.lane.b32.xlu0 %v651, 32
    %v654 = vpop.permute.xlu0 %653
    %v656 = vadd.f32 %v646, %v654
    %v657 = vtanh.pop %v656
    %659 = vrot.lane.b32.xlu0 %v657, 32
    %v660 = vpop.permute.xlu0 %659
    %v662 = vmul.f32 %v644, %v660
    %v663 = vpack.c.bf16 %v662, %v662
    %665 = vrot.lane.b32.xlu0 %v663, 64
    %v666 = vpop.permute.xlu0 %665
    %v668 = vsel %vm148, %v666, 0
    %670 = vmatprep.subr.bf16.mxu0 0
    %671 = vmatpush1.bf16.msra.mxu0 0
    %672 = vmatprep.subr.bf16.mxu0 0
    %673 = vmatpush1.bf16.msra.mxu0 0
    %674 = vmatprep.subr.bf16.mxu0 0
    %675 = vmatpush1.bf16.msra.mxu0 0
    %676 = vmatprep.subr.bf16.mxu0 0
    %677 = vmatpush1.bf16.msra.mxu0 0
    %678 = vmatprep.subr.bf16.mxu0 0
    %679 = vmatpush1.bf16.msra.mxu0 0
    %680 = vmatprep.subr.bf16.mxu0 0
    %681 = vmatpush1.bf16.msra.mxu0 0
    %682 = vmatprep.subr.bf16.mxu0 %v143
    %683 = vmatpush1.bf16.msra.mxu0 %v142
    %684 = vmatprep.subr.bf16.mxu0 %v141
    %685 = vmatpush1.bf16.msra.mxu0 %v140
    %686 = vmatprep.subr.bf16.mxu0 0
    %687 = vmatpush2.bf16.msra.mxu0 0
    %688 = vmatprep.subr.bf16.mxu0 0
    %689 = vmatpush2.bf16.msra.mxu0 0
    %690 = vmatprep.subr.bf16.mxu0 0
    %691 = vmatpush2.bf16.msra.mxu0 0
    %692 = vmatprep.subr.bf16.mxu0 0
    %693 = vmatpush2.bf16.msra.mxu0 0
    %694 = vmatprep.subr.bf16.mxu0 0
    %695 = vmatpush2.bf16.msra.mxu0 0
    %696 = vmatprep.subr.bf16.mxu0 0
    %697 = vmatpush2.bf16.msra.mxu0 0
    %698 = vmatprep.subr.bf16.mxu0 0
    %699 = vmatpush2.bf16.msra.mxu0 0
    %700 = vmatprep.subr.bf16.mxu0 0
    %701 = vmatpush2.bf16.msra.mxu0 0
    %702 = vmatprep.mubr.bf16.mxu0 0
    %703 = vmatmul.mubr.bf16.gmra.mxu0 %v668
    %v704 = vpop.f32.mrf.mxu0
    %v705 = vadd.f32 0.0, %v704
    %v706 = vpop.f32.mrf.mxu0
    %v707 = vadd.f32 0.0, %v706
    %v708 = vpop.f32.mrf.mxu0
    %v709 = vpop.f32.mrf.mxu0
    %710 = vdwg.mxu0
    %v711 = vadd.f32 %v516, %v588
    %v712 = vadd.f32 %v711, %v316
    %v713 = vxor.u32 %v712, 2147483648
    %v714 = vmul.f32 %v713, 1.442695
    %v715 = vpow.pop %v714
    %v716 = vadd.f32 %v715, 1.0
    %v717 = vrcp.pop %v716
    %v718 = vmul.f32 1.0, %v717
    %v719 = vtanh.pop %v712
    %v720 = vmul.f32 %v718, %v539
    %722 = vrot.lane.b32.xlu0 %v719, 32
    %v723 = vpop.permute.xlu0 %722
    %v725 = vmul.f32 %v718, %v723
    %727 = vrot.lane.b32.xlu0 %v725, 32
    %v728 = vpop.permute.xlu0 %727
    %v730 = vadd.f32 %v720, %v728
    %v731 = vtanh.pop %v730
    %733 = vrot.lane.b32.xlu0 %v731, 32
    %v734 = vpop.permute.xlu0 %733
    %v736 = vmul.f32 %v718, %v734
    %v737 = vpack.c.bf16 %v736, %v736
    %739 = vrot.lane.b32.xlu0 %v737, 64
    %v740 = vpop.permute.xlu0 %739
    %v742 = vsel %vm148, %v740, 0
    %744 = vmatprep.subr.bf16.mxu0 0
    %745 = vmatpush1.bf16.msra.mxu0 0
    %746 = vmatprep.subr.bf16.mxu0 0
    %747 = vmatpush1.bf16.msra.mxu0 0
    %748 = vmatprep.subr.bf16.mxu0 0
    %749 = vmatpush1.bf16.msra.mxu0 0
    %750 = vmatprep.subr.bf16.mxu0 0
    %751 = vmatpush1.bf16.msra.mxu0 0
    %752 = vmatprep.subr.bf16.mxu0 0
    %753 = vmatpush1.bf16.msra.mxu0 0
    %754 = vmatprep.subr.bf16.mxu0 0
    %755 = vmatpush1.bf16.msra.mxu0 0
    %756 = vmatprep.subr.bf16.mxu0 0
    %757 = vmatpush1.bf16.msra.mxu0 %v356
    %758 = vmatprep.subr.bf16.mxu0 0
    %759 = vmatpush1.bf16.msra.mxu0 %v355
    %760 = vmatprep.subr.bf16.mxu0 0
    %761 = vmatpush2.bf16.msra.mxu0 0
    %762 = vmatprep.subr.bf16.mxu0 0
    %763 = vmatpush2.bf16.msra.mxu0 0
    %764 = vmatprep.subr.bf16.mxu0 0
    %765 = vmatpush2.bf16.msra.mxu0 0
    %766 = vmatprep.subr.bf16.mxu0 0
    %767 = vmatpush2.bf16.msra.mxu0 0
    %768 = vmatprep.subr.bf16.mxu0 0
    %769 = vmatpush2.bf16.msra.mxu0 0
    %770 = vmatprep.subr.bf16.mxu0 0
    %771 = vmatpush2.bf16.msra.mxu0 0
    %772 = vmatprep.subr.bf16.mxu0 0
    %773 = vmatpush2.bf16.msra.mxu0 0
    %774 = vmatprep.subr.bf16.mxu0 0
    %775 = vmatpush2.bf16.msra.mxu0 0
    %776 = vmatprep.mubr.bf16.mxu0 0
    %777 = vmatmul.mubr.bf16.gmra.mxu0 %v742
    %v778 = vpop.f32.mrf.mxu0
    %v779 = vadd.f32 0.0, %v778
    %v780 = vpop.f32.mrf.mxu0
    %v781 = vpop.f32.mrf.mxu0
    %v782 = vpop.f32.mrf.mxu0
    %783 = vdwg.mxu0
    %s784 = scalar_lea.vmem %s0, 4
    %v785 = vld [vmem:[%s784] sm:$0x1]
    %v787 = vsel %vm56, %v785, 0
    %789 = vmatprep.subr.bf16.mxu0 0
    %790 = vmatpush1.bf16.msra.mxu0 0
    %791 = vmatprep.subr.bf16.mxu0 0
    %792 = vmatpush1.bf16.msra.mxu0 0
    %793 = vmatprep.subr.bf16.mxu0 0
    %794 = vmatpush1.bf16.msra.mxu0 0
    %795 = vmatprep.subr.bf16.mxu0 0
    %796 = vmatpush1.bf16.msra.mxu0 0
    %797 = vmatprep.subr.bf16.mxu0 0
    %798 = vmatpush1.bf16.msra.mxu0 0
    %799 = vmatprep.subr.bf16.mxu0 0
    %800 = vmatpush1.bf16.msra.mxu0 0
    %801 = vmatprep.subr.bf16.mxu0 0
    %802 = vmatpush1.bf16.msra.mxu0 0
    %803 = vmatprep.subr.bf16.mxu0 0
    %804 = vmatpush1.bf16.msra.mxu0 %v54
    %805 = vmatprep.subr.bf16.mxu0 0
    %806 = vmatpush2.bf16.msra.mxu0 0
    %807 = vmatprep.subr.bf16.mxu0 0
    %808 = vmatpush2.bf16.msra.mxu0 0
    %809 = vmatprep.subr.bf16.mxu0 0
    %810 = vmatpush2.bf16.msra.mxu0 0
    %811 = vmatprep.subr.bf16.mxu0 0
    %812 = vmatpush2.bf16.msra.mxu0 0
    %813 = vmatprep.subr.bf16.mxu0 0
    %814 = vmatpush2.bf16.msra.mxu0 0
    %815 = vmatprep.subr.bf16.mxu0 0
    %816 = vmatpush2.bf16.msra.mxu0 0
    %817 = vmatprep.subr.bf16.mxu0 0
    %818 = vmatpush2.bf16.msra.mxu0 0
    %819 = vmatprep.subr.bf16.mxu0 0
    %820 = vmatpush2.bf16.msra.mxu0 0
    %821 = vmatprep.mubr.bf16.mxu0 0
    %822 = vmatmul.mubr.bf16.gmra.mxu0 %v787
    %v823 = vpop.f32.mrf.mxu0
    %v824 = vadd.f32 %v705, %v823
    %v825 = vpop.f32.mrf.mxu0
    %v826 = vpop.f32.mrf.mxu0
    %v827 = vpop.f32.mrf.mxu0
    %828 = vdwg.mxu0
    %v829 = vadd.f32 %v824, %v48
    %v830 = vxor.u32 %v829, 2147483648
    %v831 = vmul.f32 %v830, 1.442695
    %v832 = vpow.pop %v831
    %v833 = vadd.f32 %v832, 1.0
    %v834 = vrcp.pop %v833
    %v835 = vmul.f32 1.0, %v834
    %v836 = vtanh.pop %v829
    %v837 = vmul.f32 %v835, %v656
    %839 = vrot.lane.b32.xlu0 %v836, 32
    %v840 = vpop.permute.xlu0 %839
    %v842 = vmul.f32 %v835, %v840
    %844 = vrot.lane.b32.xlu0 %v842, 32
    %v845 = vpop.permute.xlu0 %844
    %v847 = vadd.f32 %v837, %v845
    %v848 = vtanh.pop %v847
    %850 = vrot.lane.b32.xlu0 %v848, 32
    %v851 = vpop.permute.xlu0 %850
    %v853 = vmul.f32 %v835, %v851
    %v854 = vpack.c.bf16 %v853, %v853
    %856 = vrot.lane.b32.xlu0 %v854, 64
    %v857 = vpop.permute.xlu0 %856
    %v859 = vsel %vm148, %v857, 0
    %861 = vmatprep.subr.bf16.mxu0 0
    %862 = vmatpush1.bf16.msra.mxu0 0
    %863 = vmatprep.subr.bf16.mxu0 0
    %864 = vmatpush1.bf16.msra.mxu0 0
    %865 = vmatprep.subr.bf16.mxu0 0
    %866 = vmatpush1.bf16.msra.mxu0 0
    %867 = vmatprep.subr.bf16.mxu0 0
    %868 = vmatpush1.bf16.msra.mxu0 0
    %869 = vmatprep.subr.bf16.mxu0 0
    %870 = vmatpush1.bf16.msra.mxu0 0
    %871 = vmatprep.subr.bf16.mxu0 0
    %872 = vmatpush1.bf16.msra.mxu0 0
    %873 = vmatprep.subr.bf16.mxu0 %v143
    %874 = vmatpush1.bf16.msra.mxu0 %v142
    %875 = vmatprep.subr.bf16.mxu0 %v141
    %876 = vmatpush1.bf16.msra.mxu0 %v140
    %877 = vmatprep.subr.bf16.mxu0 0
    %878 = vmatpush2.bf16.msra.mxu0 0
    %879 = vmatprep.subr.bf16.mxu0 0
    %880 = vmatpush2.bf16.msra.mxu0 0
    %881 = vmatprep.subr.bf16.mxu0 0
    %882 = vmatpush2.bf16.msra.mxu0 0
    %883 = vmatprep.subr.bf16.mxu0 0
    %884 = vmatpush2.bf16.msra.mxu0 0
    %885 = vmatprep.subr.bf16.mxu0 0
    %886 = vmatpush2.bf16.msra.mxu0 0
    %887 = vmatprep.subr.bf16.mxu0 0
    %888 = vmatpush2.bf16.msra.mxu0 0
    %889 = vmatprep.subr.bf16.mxu0 0
    %890 = vmatpush2.bf16.msra.mxu0 0
    %891 = vmatprep.subr.bf16.mxu0 0
    %892 = vmatpush2.bf16.msra.mxu0 0
    %893 = vmatprep.mubr.bf16.mxu0 0
    %894 = vmatmul.mubr.bf16.gmra.mxu0 %v859
    %v895 = vpop.f32.mrf.mxu0
    %v896 = vadd.f32 0.0, %v895
    %v897 = vpop.f32.mrf.mxu0
    %v898 = vadd.f32 0.0, %v897
    %v899 = vpop.f32.mrf.mxu0
    %v900 = vpop.f32.mrf.mxu0
    %901 = vdwg.mxu0
    %v902 = vadd.f32 %v707, %v779
    %v903 = vadd.f32 %v902, %v316
    %v904 = vxor.u32 %v903, 2147483648
    %v905 = vmul.f32 %v904, 1.442695
    %v906 = vpow.pop %v905
    %v907 = vadd.f32 %v906, 1.0
    %v908 = vrcp.pop %v907
    %v909 = vmul.f32 1.0, %v908
    %v910 = vtanh.pop %v903
    %v911 = vmul.f32 %v909, %v730
    %913 = vrot.lane.b32.xlu0 %v910, 32
    %v914 = vpop.permute.xlu0 %913
    %v916 = vmul.f32 %v909, %v914
    %918 = vrot.lane.b32.xlu0 %v916, 32
    %v919 = vpop.permute.xlu0 %918
    %v921 = vadd.f32 %v911, %v919
    %v922 = vtanh.pop %v921
    %924 = vrot.lane.b32.xlu0 %v922, 32
    %v925 = vpop.permute.xlu0 %924
    %v927 = vmul.f32 %v909, %v925
    %v928 = vpack.c.bf16 %v927, %v927
    %930 = vrot.lane.b32.xlu0 %v928, 64
    %v931 = vpop.permute.xlu0 %930
    %v933 = vsel %vm148, %v931, 0
    %935 = vmatprep.subr.bf16.mxu0 0
    %936 = vmatpush1.bf16.msra.mxu0 0
    %937 = vmatprep.subr.bf16.mxu0 0
    %938 = vmatpush1.bf16.msra.mxu0 0
    %939 = vmatprep.subr.bf16.mxu0 0
    %940 = vmatpush1.bf16.msra.mxu0 0
    %941 = vmatprep.subr.bf16.mxu0 0
    %942 = vmatpush1.bf16.msra.mxu0 0
    %943 = vmatprep.subr.bf16.mxu0 0
    %944 = vmatpush1.bf16.msra.mxu0 0
    %945 = vmatprep.subr.bf16.mxu0 0
    %946 = vmatpush1.bf16.msra.mxu0 0
    %947 = vmatprep.subr.bf16.mxu0 0
    %948 = vmatpush1.bf16.msra.mxu0 %v356
    %949 = vmatprep.subr.bf16.mxu0 0
    %950 = vmatpush1.bf16.msra.mxu0 %v355
    %951 = vmatprep.subr.bf16.mxu0 0
    %952 = vmatpush2.bf16.msra.mxu0 0
    %953 = vmatprep.subr.bf16.mxu0 0
    %954 = vmatpush2.bf16.msra.mxu0 0
    %955 = vmatprep.subr.bf16.mxu0 0
    %956 = vmatpush2.bf16.msra.mxu0 0
    %957 = vmatprep.subr.bf16.mxu0 0
    %958 = vmatpush2.bf16.msra.mxu0 0
    %959 = vmatprep.subr.bf16.mxu0 0
    %960 = vmatpush2.bf16.msra.mxu0 0
    %961 = vmatprep.subr.bf16.mxu0 0
    %962 = vmatpush2.bf16.msra.mxu0 0
    %963 = vmatprep.subr.bf16.mxu0 0
    %964 = vmatpush2.bf16.msra.mxu0 0
    %965 = vmatprep.subr.bf16.mxu0 0
    %966 = vmatpush2.bf16.msra.mxu0 0
    %967 = vmatprep.mubr.bf16.mxu0 0
    %968 = vmatmul.mubr.bf16.gmra.mxu0 %v933
    %v969 = vpop.f32.mrf.mxu0
    %v970 = vadd.f32 0.0, %v969
    %v971 = vpop.f32.mrf.mxu0
    %v972 = vpop.f32.mrf.mxu0
    %v973 = vpop.f32.mrf.mxu0
    %974 = vdwg.mxu0
    %s975 = scalar_lea.vmem %s0, 5
    %v976 = vld [vmem:[%s975] sm:$0x1]
    %v978 = vsel %vm56, %v976, 0
    %980 = vmatprep.subr.bf16.mxu0 0
    %981 = vmatpush1.bf16.msra.mxu0 0
    %982 = vmatprep.subr.bf16.mxu0 0
    %983 = vmatpush1.bf16.msra.mxu0 0
    %984 = vmatprep.subr.bf16.mxu0 0
    %985 = vmatpush1.bf16.msra.mxu0 0
    %986 = vmatprep.subr.bf16.mxu0 0
    %987 = vmatpush1.bf16.msra.mxu0 0
    %988 = vmatprep.subr.bf16.mxu0 0
    %989 = vmatpush1.bf16.msra.mxu0 0
    %990 = vmatprep.subr.bf16.mxu0 0
    %991 = vmatpush1.bf16.msra.mxu0 0
    %992 = vmatprep.subr.bf16.mxu0 0
    %993 = vmatpush1.bf16.msra.mxu0 0
    %994 = vmatprep.subr.bf16.mxu0 0
    %995 = vmatpush1.bf16.msra.mxu0 %v54
    %996 = vmatprep.subr.bf16.mxu0 0
    %997 = vmatpush2.bf16.msra.mxu0 0
    %998 = vmatprep.subr.bf16.mxu0 0
    %999 = vmatpush2.bf16.msra.mxu0 0
    %1000 = vmatprep.subr.bf16.mxu0 0
    %1001 = vmatpush2.bf16.msra.mxu0 0
    %1002 = vmatprep.subr.bf16.mxu0 0
    %1003 = vmatpush2.bf16.msra.mxu0 0
    %1004 = vmatprep.subr.bf16.mxu0 0
    %1005 = vmatpush2.bf16.msra.mxu0 0
    %1006 = vmatprep.subr.bf16.mxu0 0
    %1007 = vmatpush2.bf16.msra.mxu0 0
    %1008 = vmatprep.subr.bf16.mxu0 0
    %1009 = vmatpush2.bf16.msra.mxu0 0
    %1010 = vmatprep.subr.bf16.mxu0 0
    %1011 = vmatpush2.bf16.msra.mxu0 0
    %1012 = vmatprep.mubr.bf16.mxu0 0
    %1013 = vmatmul.mubr.bf16.gmra.mxu0 %v978
    %v1014 = vpop.f32.mrf.mxu0
    %v1015 = vadd.f32 %v896, %v1014
    %v1016 = vpop.f32.mrf.mxu0
    %v1017 = vpop.f32.mrf.mxu0
    %v1018 = vpop.f32.mrf.mxu0
    %1019 = vdwg.mxu0
    %v1020 = vadd.f32 %v1015, %v48
    %v1021 = vxor.u32 %v1020, 2147483648
    %v1022 = vmul.f32 %v1021, 1.442695
    %v1023 = vpow.pop %v1022
    %v1024 = vadd.f32 %v1023, 1.0
    %v1025 = vrcp.pop %v1024
    %v1026 = vmul.f32 1.0, %v1025
    %v1027 = vtanh.pop %v1020
    %v1028 = vmul.f32 %v1026, %v847
    %1030 = vrot.lane.b32.xlu0 %v1027, 32
    %v1031 = vpop.permute.xlu0 %1030
    %v1033 = vmul.f32 %v1026, %v1031
    %1035 = vrot.lane.b32.xlu0 %v1033, 32
    %v1036 = vpop.permute.xlu0 %1035
    %v1038 = vadd.f32 %v1028, %v1036
    %v1039 = vtanh.pop %v1038
    %1041 = vrot.lane.b32.xlu0 %v1039, 32
    %v1042 = vpop.permute.xlu0 %1041
    %v1044 = vmul.f32 %v1026, %v1042
    %v1045 = vpack.c.bf16 %v1044, %v1044
    %1047 = vrot.lane.b32.xlu0 %v1045, 64
    %v1048 = vpop.permute.xlu0 %1047
    %v1050 = vsel %vm148, %v1048, 0
    %1052 = vmatprep.subr.bf16.mxu0 0
    %1053 = vmatpush1.bf16.msra.mxu0 0
    %1054 = vmatprep.subr.bf16.mxu0 0
    %1055 = vmatpush1.bf16.msra.mxu0 0
    %1056 = vmatprep.subr.bf16.mxu0 0
    %1057 = vmatpush1.bf16.msra.mxu0 0
    %1058 = vmatprep.subr.bf16.mxu0 0
    %1059 = vmatpush1.bf16.msra.mxu0 0
    %1060 = vmatprep.subr.bf16.mxu0 0
    %1061 = vmatpush1.bf16.msra.mxu0 0
    %1062 = vmatprep.subr.bf16.mxu0 0
    %1063 = vmatpush1.bf16.msra.mxu0 0
    %1064 = vmatprep.subr.bf16.mxu0 %v143
    %1065 = vmatpush1.bf16.msra.mxu0 %v142
    %1066 = vmatprep.subr.bf16.mxu0 %v141
    %1067 = vmatpush1.bf16.msra.mxu0 %v140
    %1068 = vmatprep.subr.bf16.mxu0 0
    %1069 = vmatpush2.bf16.msra.mxu0 0
    %1070 = vmatprep.subr.bf16.mxu0 0
    %1071 = vmatpush2.bf16.msra.mxu0 0
    %1072 = vmatprep.subr.bf16.mxu0 0
    %1073 = vmatpush2.bf16.msra.mxu0 0
    %1074 = vmatprep.subr.bf16.mxu0 0
    %1075 = vmatpush2.bf16.msra.mxu0 0
    %1076 = vmatprep.subr.bf16.mxu0 0
    %1077 = vmatpush2.bf16.msra.mxu0 0
    %1078 = vmatprep.subr.bf16.mxu0 0
    %1079 = vmatpush2.bf16.msra.mxu0 0
    %1080 = vmatprep.subr.bf16.mxu0 0
    %1081 = vmatpush2.bf16.msra.mxu0 0
    %1082 = vmatprep.subr.bf16.mxu0 0
    %1083 = vmatpush2.bf16.msra.mxu0 0
    %1084 = vmatprep.mubr.bf16.mxu0 0
    %1085 = vmatmul.mubr.bf16.gmra.mxu0 %v1050
    %v1086 = vpop.f32.mrf.mxu0
    %v1087 = vadd.f32 0.0, %v1086
    %v1088 = vpop.f32.mrf.mxu0
    %v1089 = vadd.f32 0.0, %v1088
    %v1090 = vpop.f32.mrf.mxu0
    %v1091 = vpop.f32.mrf.mxu0
    %1092 = vdwg.mxu0
    %v1093 = vadd.f32 %v898, %v970
    %v1094 = vadd.f32 %v1093, %v316
    %v1095 = vxor.u32 %v1094, 2147483648
    %v1096 = vmul.f32 %v1095, 1.442695
    %v1097 = vpow.pop %v1096
    %v1098 = vadd.f32 %v1097, 1.0
    %v1099 = vrcp.pop %v1098
    %v1100 = vmul.f32 1.0, %v1099
    %v1101 = vtanh.pop %v1094
    %v1102 = vmul.f32 %v1100, %v921
    %1104 = vrot.lane.b32.xlu0 %v1101, 32
    %v1105 = vpop.permute.xlu0 %1104
    %v1107 = vmul.f32 %v1100, %v1105
    %1109 = vrot.lane.b32.xlu0 %v1107, 32
    %v1110 = vpop.permute.xlu0 %1109
    %v1112 = vadd.f32 %v1102, %v1110
    %v1113 = vtanh.pop %v1112
    %1115 = vrot.lane.b32.xlu0 %v1113, 32
    %v1116 = vpop.permute.xlu0 %1115
    %v1118 = vmul.f32 %v1100, %v1116
    %v1119 = vpack.c.bf16 %v1118, %v1118
    %1121 = vrot.lane.b32.xlu0 %v1119, 64
    %v1122 = vpop.permute.xlu0 %1121
    %v1124 = vsel %vm148, %v1122, 0
    %1126 = vmatprep.subr.bf16.mxu0 0
    %1127 = vmatpush1.bf16.msra.mxu0 0
    %1128 = vmatprep.subr.bf16.mxu0 0
    %1129 = vmatpush1.bf16.msra.mxu0 0
    %1130 = vmatprep.subr.bf16.mxu0 0
    %1131 = vmatpush1.bf16.msra.mxu0 0
    %1132 = vmatprep.subr.bf16.mxu0 0
    %1133 = vmatpush1.bf16.msra.mxu0 0
    %1134 = vmatprep.subr.bf16.mxu0 0
    %1135 = vmatpush1.bf16.msra.mxu0 0
    %1136 = vmatprep.subr.bf16.mxu0 0
    %1137 = vmatpush1.bf16.msra.mxu0 0
    %1138 = vmatprep.subr.bf16.mxu0 0
    %1139 = vmatpush1.bf16.msra.mxu0 %v356
    %1140 = vmatprep.subr.bf16.mxu0 0
    %1141 = vmatpush1.bf16.msra.mxu0 %v355
    %1142 = vmatprep.subr.bf16.mxu0 0
    %1143 = vmatpush2.bf16.msra.mxu0 0
    %1144 = vmatprep.subr.bf16.mxu0 0
    %1145 = vmatpush2.bf16.msra.mxu0 0
    %1146 = vmatprep.subr.bf16.mxu0 0
    %1147 = vmatpush2.bf16.msra.mxu0 0
    %1148 = vmatprep.subr.bf16.mxu0 0
    %1149 = vmatpush2.bf16.msra.mxu0 0
    %1150 = vmatprep.subr.bf16.mxu0 0
    %1151 = vmatpush2.bf16.msra.mxu0 0
    %1152 = vmatprep.subr.bf16.mxu0 0
    %1153 = vmatpush2.bf16.msra.mxu0 0
    %1154 = vmatprep.subr.bf16.mxu0 0
    %1155 = vmatpush2.bf16.msra.mxu0 0
    %1156 = vmatprep.subr.bf16.mxu0 0
    %1157 = vmatpush2.bf16.msra.mxu0 0
    %1158 = vmatprep.mubr.bf16.mxu0 0
    %1159 = vmatmul.mubr.bf16.gmra.mxu0 %v1124
    %v1160 = vpop.f32.mrf.mxu0
    %v1161 = vadd.f32 0.0, %v1160
    %v1162 = vpop.f32.mrf.mxu0
    %v1163 = vpop.f32.mrf.mxu0
    %v1164 = vpop.f32.mrf.mxu0
    %1165 = vdwg.mxu0
    %s1166 = scalar_lea.vmem %s0, 6
    %v1167 = vld [vmem:[%s1166] sm:$0x1]
    %v1169 = vsel %vm56, %v1167, 0
    %1171 = vmatprep.subr.bf16.mxu0 0
    %1172 = vmatpush1.bf16.msra.mxu0 0
    %1173 = vmatprep.subr.bf16.mxu0 0
    %1174 = vmatpush1.bf16.msra.mxu0 0
    %1175 = vmatprep.subr.bf16.mxu0 0
    %1176 = vmatpush1.bf16.msra.mxu0 0
    %1177 = vmatprep.subr.bf16.mxu0 0
    %1178 = vmatpush1.bf16.msra.mxu0 0
    %1179 = vmatprep.subr.bf16.mxu0 0
    %1180 = vmatpush1.bf16.msra.mxu0 0
    %1181 = vmatprep.subr.bf16.mxu0 0
    %1182 = vmatpush1.bf16.msra.mxu0 0
    %1183 = vmatprep.subr.bf16.mxu0 0
    %1184 = vmatpush1.bf16.msra.mxu0 0
    %1185 = vmatprep.subr.bf16.mxu0 0
    %1186 = vmatpush1.bf16.msra.mxu0 %v54
    %1187 = vmatprep.subr.bf16.mxu0 0
    %1188 = vmatpush2.bf16.msra.mxu0 0
    %1189 = vmatprep.subr.bf16.mxu0 0
    %1190 = vmatpush2.bf16.msra.mxu0 0
    %1191 = vmatprep.subr.bf16.mxu0 0
    %1192 = vmatpush2.bf16.msra.mxu0 0
    %1193 = vmatprep.subr.bf16.mxu0 0
    %1194 = vmatpush2.bf16.msra.mxu0 0
    %1195 = vmatprep.subr.bf16.mxu0 0
    %1196 = vmatpush2.bf16.msra.mxu0 0
    %1197 = vmatprep.subr.bf16.mxu0 0
    %1198 = vmatpush2.bf16.msra.mxu0 0
    %1199 = vmatprep.subr.bf16.mxu0 0
    %1200 = vmatpush2.bf16.msra.mxu0 0
    %1201 = vmatprep.subr.bf16.mxu0 0
    %1202 = vmatpush2.bf16.msra.mxu0 0
    %1203 = vmatprep.mubr.bf16.mxu0 0
    %1204 = vmatmul.mubr.bf16.gmra.mxu0 %v1169
    %v1205 = vpop.f32.mrf.mxu0
    %v1206 = vadd.f32 %v1087, %v1205
    %v1207 = vpop.f32.mrf.mxu0
    %v1208 = vpop.f32.mrf.mxu0
    %v1209 = vpop.f32.mrf.mxu0
    %1210 = vdwg.mxu0
    %v1211 = vadd.f32 %v1206, %v48
    %v1212 = vxor.u32 %v1211, 2147483648
    %v1213 = vmul.f32 %v1212, 1.442695
    %v1214 = vpow.pop %v1213
    %v1215 = vadd.f32 %v1214, 1.0
    %v1216 = vrcp.pop %v1215
    %v1217 = vmul.f32 1.0, %v1216
    %v1218 = vtanh.pop %v1211
    %v1219 = vmul.f32 %v1217, %v1038
    %1221 = vrot.lane.b32.xlu0 %v1218, 32
    %v1222 = vpop.permute.xlu0 %1221
    %v1224 = vmul.f32 %v1217, %v1222
    %1226 = vrot.lane.b32.xlu0 %v1224, 32
    %v1227 = vpop.permute.xlu0 %1226
    %v1229 = vadd.f32 %v1219, %v1227
    %v1230 = vtanh.pop %v1229
    %1232 = vrot.lane.b32.xlu0 %v1230, 32
    %v1233 = vpop.permute.xlu0 %1232
    %v1235 = vmul.f32 %v1217, %v1233
    %v1236 = vpack.c.bf16 %v1235, %v1235
    %1238 = vrot.lane.b32.xlu0 %v1236, 64
    %v1239 = vpop.permute.xlu0 %1238
    %v1241 = vsel %vm148, %v1239, 0
    %1243 = vmatprep.subr.bf16.mxu0 0
    %1244 = vmatpush1.bf16.msra.mxu0 0
    %1245 = vmatprep.subr.bf16.mxu0 0
    %1246 = vmatpush1.bf16.msra.mxu0 0
    %1247 = vmatprep.subr.bf16.mxu0 0
    %1248 = vmatpush1.bf16.msra.mxu0 0
    %1249 = vmatprep.subr.bf16.mxu0 0
    %1250 = vmatpush1.bf16.msra.mxu0 0
    %1251 = vmatprep.subr.bf16.mxu0 0
    %1252 = vmatpush1.bf16.msra.mxu0 0
    %1253 = vmatprep.subr.bf16.mxu0 0
    %1254 = vmatpush1.bf16.msra.mxu0 0
    %1255 = vmatprep.subr.bf16.mxu0 %v143
    %1256 = vmatpush1.bf16.msra.mxu0 %v142
    %1257 = vmatprep.subr.bf16.mxu0 %v141
    %1258 = vmatpush1.bf16.msra.mxu0 %v140
    %1259 = vmatprep.subr.bf16.mxu0 0
    %1260 = vmatpush2.bf16.msra.mxu0 0
    %1261 = vmatprep.subr.bf16.mxu0 0
    %1262 = vmatpush2.bf16.msra.mxu0 0
    %1263 = vmatprep.subr.bf16.mxu0 0
    %1264 = vmatpush2.bf16.msra.mxu0 0
    %1265 = vmatprep.subr.bf16.mxu0 0
    %1266 = vmatpush2.bf16.msra.mxu0 0
    %1267 = vmatprep.subr.bf16.mxu0 0
    %1268 = vmatpush2.bf16.msra.mxu0 0
    %1269 = vmatprep.subr.bf16.mxu0 0
    %1270 = vmatpush2.bf16.msra.mxu0 0
    %1271 = vmatprep.subr.bf16.mxu0 0
    %1272 = vmatpush2.bf16.msra.mxu0 0
    %1273 = vmatprep.subr.bf16.mxu0 0
    %1274 = vmatpush2.bf16.msra.mxu0 0
    %1275 = vmatprep.mubr.bf16.mxu0 0
    %1276 = vmatmul.mubr.bf16.gmra.mxu0 %v1241
    %v1277 = vpop.f32.mrf.mxu0
    %v1278 = vadd.f32 0.0, %v1277
    %v1279 = vpop.f32.mrf.mxu0
    %v1280 = vadd.f32 0.0, %v1279
    %v1281 = vpop.f32.mrf.mxu0
    %v1282 = vpop.f32.mrf.mxu0
    %1283 = vdwg.mxu0
    %v1284 = vadd.f32 %v1089, %v1161
    %v1285 = vadd.f32 %v1284, %v316
    %v1286 = vxor.u32 %v1285, 2147483648
    %v1287 = vmul.f32 %v1286, 1.442695
    %v1288 = vpow.pop %v1287
    %v1289 = vadd.f32 %v1288, 1.0
    %v1290 = vrcp.pop %v1289
    %v1291 = vmul.f32 1.0, %v1290
    %v1292 = vtanh.pop %v1285
    %v1293 = vmul.f32 %v1291, %v1112
    %1295 = vrot.lane.b32.xlu0 %v1292, 32
    %v1296 = vpop.permute.xlu0 %1295
    %v1298 = vmul.f32 %v1291, %v1296
    %1300 = vrot.lane.b32.xlu0 %v1298, 32
    %v1301 = vpop.permute.xlu0 %1300
    %v1303 = vadd.f32 %v1293, %v1301
    %v1304 = vtanh.pop %v1303
    %1306 = vrot.lane.b32.xlu0 %v1304, 32
    %v1307 = vpop.permute.xlu0 %1306
    %v1309 = vmul.f32 %v1291, %v1307
    %v1310 = vpack.c.bf16 %v1309, %v1309
    %1312 = vrot.lane.b32.xlu0 %v1310, 64
    %v1313 = vpop.permute.xlu0 %1312
    %v1315 = vsel %vm148, %v1313, 0
    %1317 = vmatprep.subr.bf16.mxu0 0
    %1318 = vmatpush1.bf16.msra.mxu0 0
    %1319 = vmatprep.subr.bf16.mxu0 0
    %1320 = vmatpush1.bf16.msra.mxu0 0
    %1321 = vmatprep.subr.bf16.mxu0 0
    %1322 = vmatpush1.bf16.msra.mxu0 0
    %1323 = vmatprep.subr.bf16.mxu0 0
    %1324 = vmatpush1.bf16.msra.mxu0 0
    %1325 = vmatprep.subr.bf16.mxu0 0
    %1326 = vmatpush1.bf16.msra.mxu0 0
    %1327 = vmatprep.subr.bf16.mxu0 0
    %1328 = vmatpush1.bf16.msra.mxu0 0
    %1329 = vmatprep.subr.bf16.mxu0 0
    %1330 = vmatpush1.bf16.msra.mxu0 %v356
    %1331 = vmatprep.subr.bf16.mxu0 0
    %1332 = vmatpush1.bf16.msra.mxu0 %v355
    %1333 = vmatprep.subr.bf16.mxu0 0
    %1334 = vmatpush2.bf16.msra.mxu0 0
    %1335 = vmatprep.subr.bf16.mxu0 0
    %1336 = vmatpush2.bf16.msra.mxu0 0
    %1337 = vmatprep.subr.bf16.mxu0 0
    %1338 = vmatpush2.bf16.msra.mxu0 0
    %1339 = vmatprep.subr.bf16.mxu0 0
    %1340 = vmatpush2.bf16.msra.mxu0 0
    %1341 = vmatprep.subr.bf16.mxu0 0
    %1342 = vmatpush2.bf16.msra.mxu0 0
    %1343 = vmatprep.subr.bf16.mxu0 0
    %1344 = vmatpush2.bf16.msra.mxu0 0
    %1345 = vmatprep.subr.bf16.mxu0 0
    %1346 = vmatpush2.bf16.msra.mxu0 0
    %1347 = vmatprep.subr.bf16.mxu0 0
    %1348 = vmatpush2.bf16.msra.mxu0 0
    %1349 = vmatprep.mubr.bf16.mxu0 0
    %1350 = vmatmul.mubr.bf16.gmra.mxu0 %v1315
    %v1351 = vpop.f32.mrf.mxu0
    %v1352 = vadd.f32 0.0, %v1351
    %v1353 = vpop.f32.mrf.mxu0
    %v1354 = vpop.f32.mrf.mxu0
    %v1355 = vpop.f32.mrf.mxu0
    %1356 = vdwg.mxu0
    %s1357 = scalar_lea.vmem %s0, 7
    %v1358 = vld [vmem:[%s1357] sm:$0x1]
    %v1360 = vsel %vm56, %v1358, 0
    %1362 = vmatprep.subr.bf16.mxu0 0
    %1363 = vmatpush1.bf16.msra.mxu0 0
    %1364 = vmatprep.subr.bf16.mxu0 0
    %1365 = vmatpush1.bf16.msra.mxu0 0
    %1366 = vmatprep.subr.bf16.mxu0 0
    %1367 = vmatpush1.bf16.msra.mxu0 0
    %1368 = vmatprep.subr.bf16.mxu0 0
    %1369 = vmatpush1.bf16.msra.mxu0 0
    %1370 = vmatprep.subr.bf16.mxu0 0
    %1371 = vmatpush1.bf16.msra.mxu0 0
    %1372 = vmatprep.subr.bf16.mxu0 0
    %1373 = vmatpush1.bf16.msra.mxu0 0
    %1374 = vmatprep.subr.bf16.mxu0 0
    %1375 = vmatpush1.bf16.msra.mxu0 0
    %1376 = vmatprep.subr.bf16.mxu0 0
    %1377 = vmatpush1.bf16.msra.mxu0 %v54
    %1378 = vmatprep.subr.bf16.mxu0 0
    %1379 = vmatpush2.bf16.msra.mxu0 0
    %1380 = vmatprep.subr.bf16.mxu0 0
    %1381 = vmatpush2.bf16.msra.mxu0 0
    %1382 = vmatprep.subr.bf16.mxu0 0
    %1383 = vmatpush2.bf16.msra.mxu0 0
    %1384 = vmatprep.subr.bf16.mxu0 0
    %1385 = vmatpush2.bf16.msra.mxu0 0
    %1386 = vmatprep.subr.bf16.mxu0 0
    %1387 = vmatpush2.bf16.msra.mxu0 0
    %1388 = vmatprep.subr.bf16.mxu0 0
    %1389 = vmatpush2.bf16.msra.mxu0 0
    %1390 = vmatprep.subr.bf16.mxu0 0
    %1391 = vmatpush2.bf16.msra.mxu0 0
    %1392 = vmatprep.subr.bf16.mxu0 0
    %1393 = vmatpush2.bf16.msra.mxu0 0
    %1394 = vmatprep.mubr.bf16.mxu0 0
    %1395 = vmatmul.mubr.bf16.gmra.mxu0 %v1360
    %v1396 = vpop.f32.mrf.mxu0
    %v1397 = vadd.f32 %v1278, %v1396
    %v1398 = vpop.f32.mrf.mxu0
    %v1399 = vpop.f32.mrf.mxu0
    %v1400 = vpop.f32.mrf.mxu0
    %1401 = vdwg.mxu0
    %v1402 = vadd.f32 %v1397, %v48
    %v1403 = vxor.u32 %v1402, 2147483648
    %v1404 = vmul.f32 %v1403, 1.442695
    %v1405 = vpow.pop %v1404
    %v1406 = vadd.f32 %v1405, 1.0
    %v1407 = vrcp.pop %v1406
    %v1408 = vmul.f32 1.0, %v1407
    %v1409 = vtanh.pop %v1402
    %v1410 = vmul.f32 %v1408, %v1229
    %1412 = vrot.lane.b32.xlu0 %v1409, 32
    %v1413 = vpop.permute.xlu0 %1412
    %v1415 = vmul.f32 %v1408, %v1413
    %1417 = vrot.lane.b32.xlu0 %v1415, 32
    %v1418 = vpop.permute.xlu0 %1417
    %v1420 = vadd.f32 %v1410, %v1418
    %v1421 = vtanh.pop %v1420
    %1423 = vrot.lane.b32.xlu0 %v1421, 32
    %v1424 = vpop.permute.xlu0 %1423
    %v1426 = vmul.f32 %v1408, %v1424
    %v1427 = vpack.c.bf16 %v1426, %v1426
    %1429 = vrot.lane.b32.xlu0 %v1427, 64
    %v1430 = vpop.permute.xlu0 %1429
    %v1432 = vsel %vm148, %v1430, 0
    %1434 = vmatprep.subr.bf16.mxu0 0
    %1435 = vmatpush1.bf16.msra.mxu0 0
    %1436 = vmatprep.subr.bf16.mxu0 0
    %1437 = vmatpush1.bf16.msra.mxu0 0
    %1438 = vmatprep.subr.bf16.mxu0 0
    %1439 = vmatpush1.bf16.msra.mxu0 0
    %1440 = vmatprep.subr.bf16.mxu0 0
    %1441 = vmatpush1.bf16.msra.mxu0 0
    %1442 = vmatprep.subr.bf16.mxu0 0
    %1443 = vmatpush1.bf16.msra.mxu0 0
    %1444 = vmatprep.subr.bf16.mxu0 0
    %1445 = vmatpush1.bf16.msra.mxu0 0
    %1446 = vmatprep.subr.bf16.mxu0 %v143
    %1447 = vmatpush1.bf16.msra.mxu0 %v142
    %1448 = vmatprep.subr.bf16.mxu0 %v141
    %1449 = vmatpush1.bf16.msra.mxu0 %v140
    %1450 = vmatprep.subr.bf16.mxu0 0
    %1451 = vmatpush2.bf16.msra.mxu0 0
    %1452 = vmatprep.subr.bf16.mxu0 0
    %1453 = vmatpush2.bf16.msra.mxu0 0
    %1454 = vmatprep.subr.bf16.mxu0 0
    %1455 = vmatpush2.bf16.msra.mxu0 0
    %1456 = vmatprep.subr.bf16.mxu0 0
    %1457 = vmatpush2.bf16.msra.mxu0 0
    %1458 = vmatprep.subr.bf16.mxu0 0
    %1459 = vmatpush2.bf16.msra.mxu0 0
    %1460 = vmatprep.subr.bf16.mxu0 0
    %1461 = vmatpush2.bf16.msra.mxu0 0
    %1462 = vmatprep.subr.bf16.mxu0 0
    %1463 = vmatpush2.bf16.msra.mxu0 0
    %1464 = vmatprep.subr.bf16.mxu0 0
    %1465 = vmatpush2.bf16.msra.mxu0 0
    %1466 = vmatprep.mubr.bf16.mxu0 0
    %1467 = vmatmul.mubr.bf16.gmra.mxu0 %v1432
    %v1468 = vpop.f32.mrf.mxu0
    %v1469 = vpop.f32.mrf.mxu0
    %v1470 = vadd.f32 0.0, %v1469
    %v1471 = vpop.f32.mrf.mxu0
    %v1472 = vpop.f32.mrf.mxu0
    %1473 = vdwg.mxu0
    %v1474 = vadd.f32 %v1280, %v1352
    %v1475 = vadd.f32 %v1474, %v316
    %v1476 = vxor.u32 %v1475, 2147483648
    %v1477 = vmul.f32 %v1476, 1.442695
    %v1478 = vpow.pop %v1477
    %v1479 = vadd.f32 %v1478, 1.0
    %v1480 = vrcp.pop %v1479
    %v1481 = vmul.f32 1.0, %v1480
    %v1482 = vtanh.pop %v1475
    %v1483 = vmul.f32 %v1481, %v1303
    %1485 = vrot.lane.b32.xlu0 %v1482, 32
    %v1486 = vpop.permute.xlu0 %1485
    %v1488 = vmul.f32 %v1481, %v1486
    %1490 = vrot.lane.b32.xlu0 %v1488, 32
    %v1491 = vpop.permute.xlu0 %1490
    %v1493 = vadd.f32 %v1483, %v1491
    %v1494 = vtanh.pop %v1493
    %1496 = vrot.lane.b32.xlu0 %v1494, 32
    %v1497 = vpop.permute.xlu0 %1496
    %v1499 = vmul.f32 %v1481, %v1497
    %v1500 = vpack.c.bf16 %v1499, %v1499
    %1502 = vrot.lane.b32.xlu0 %v1500, 64
    %v1503 = vpop.permute.xlu0 %1502
    %v1505 = vsel %vm148, %v1503, 0
    %1507 = vmatprep.subr.bf16.mxu0 0
    %1508 = vmatpush1.bf16.msra.mxu0 0
    %1509 = vmatprep.subr.bf16.mxu0 0
    %1510 = vmatpush1.bf16.msra.mxu0 0
    %1511 = vmatprep.subr.bf16.mxu0 0
    %1512 = vmatpush1.bf16.msra.mxu0 0
    %1513 = vmatprep.subr.bf16.mxu0 0
    %1514 = vmatpush1.bf16.msra.mxu0 0
    %1515 = vmatprep.subr.bf16.mxu0 0
    %1516 = vmatpush1.bf16.msra.mxu0 0
    %1517 = vmatprep.subr.bf16.mxu0 0
    %1518 = vmatpush1.bf16.msra.mxu0 0
    %1519 = vmatprep.subr.bf16.mxu0 0
    %1520 = vmatpush1.bf16.msra.mxu0 %v356
    %1521 = vmatprep.subr.bf16.mxu0 0
    %1522 = vmatpush1.bf16.msra.mxu0 %v355
    %1523 = vmatprep.subr.bf16.mxu0 0
    %1524 = vmatpush2.bf16.msra.mxu0 0
    %1525 = vmatprep.subr.bf16.mxu0 0
    %1526 = vmatpush2.bf16.msra.mxu0 0
    %1527 = vmatprep.subr.bf16.mxu0 0
    %1528 = vmatpush2.bf16.msra.mxu0 0
    %1529 = vmatprep.subr.bf16.mxu0 0
    %1530 = vmatpush2.bf16.msra.mxu0 0
    %1531 = vmatprep.subr.bf16.mxu0 0
    %1532 = vmatpush2.bf16.msra.mxu0 0
    %1533 = vmatprep.subr.bf16.mxu0 0
    %1534 = vmatpush2.bf16.msra.mxu0 0
    %1535 = vmatprep.subr.bf16.mxu0 0
    %1536 = vmatpush2.bf16.msra.mxu0 0
    %1537 = vmatprep.subr.bf16.mxu0 0
    %1538 = vmatpush2.bf16.msra.mxu0 0
    %1539 = vmatprep.mubr.bf16.mxu0 0
    %1540 = vmatmul.mubr.bf16.gmra.mxu0 %v1505
    %v1541 = vpop.f32.mrf.mxu0
    %v1542 = vadd.f32 0.0, %v1541
    %v1543 = vpop.f32.mrf.mxu0
    %v1544 = vpop.f32.mrf.mxu0
    %v1545 = vpop.f32.mrf.mxu0
    %1546 = vdwg.mxu0
    %v1547 = vadd.f32 %v1470, %v1542
    %v1548 = vadd.f32 %v1547, %v316
    %v1549 = vxor.u32 %v1548, 2147483648
    %v1550 = vmul.f32 %v1549, 1.442695
    %v1551 = vpow.pop %v1550
    %v1552 = vadd.f32 %v1551, 1.0
    %v1553 = vrcp.pop %v1552
    %v1554 = vmul.f32 1.0, %v1553
    %v1555 = vtanh.pop %v1548
    %v1556 = vmul.f32 %v1554, %v1493
    %1558 = vrot.lane.b32.xlu0 %v1555, 32
    %v1559 = vpop.permute.xlu0 %1558
    %v1561 = vmul.f32 %v1554, %v1559
    %1563 = vrot.lane.b32.xlu0 %v1561, 32
    %v1564 = vpop.permute.xlu0 %1563
    %v1566 = vadd.f32 %v1556, %v1564
    %v1567 = vtanh.pop %v1566
    %1569 = vrot.lane.b32.xlu0 %v1567, 32
    %v1570 = vpop.permute.xlu0 %1569
    %v1572 = vmul.f32 %v1554, %v1570
    %v1573 = vpack.c.bf16 %v1572, %v1572
    %v1574 = vld [vmem:[%s6] sm:$0xf]
    %v1575 = vld [vmem:[%s6 + $0x4] sm:$0xf]
    %v1576 = vld [vmem:[%s6 + $0x8] sm:$0xf]
    %v1577 = vld [vmem:[%s6 + $0xc] sm:$0xf]
    %v1578 = vld [vmem:[%s7] sm:$0x1]
    %v1580 = vlaneseq
    %v1581 = vshrl.u32 %v1580, 7
    %v1582 = vsub.s32 0, %v1581
    %v1583 = vrot.slane %v1578, %v1582
    %1586 = vrot.lane.b32.xlu0 %v1573, 64
    %v1587 = vpop.permute.xlu0 %1586
    %v1592 = vunpack.c.l.b16 %v1574
    %v1593 = vunpack.c.l.b16 %v1575
    %v1594 = vunpack.c.l.b16 %v1576
    %v1595 = vunpack.c.l.b16 %v1577
    %v1596 = vpack.c.b16 %v1593, %v1592
    %v1597 = vpack.c.b16 %v1595, %v1594
    %v1601 = vsel %vm148, %v1587, 0
    %1603 = vmatprep.subr.bf16.mxu0 0
    %1604 = vmatpush1.bf16.msra.mxu0 0
    %1605 = vmatprep.subr.bf16.mxu0 0
    %1606 = vmatpush1.bf16.msra.mxu0 0
    %1607 = vmatprep.subr.bf16.mxu0 0
    %1608 = vmatpush1.bf16.msra.mxu0 0
    %1609 = vmatprep.subr.bf16.mxu0 0
    %1610 = vmatpush1.bf16.msra.mxu0 0
    %1611 = vmatprep.subr.bf16.mxu0 0
    %1612 = vmatpush1.bf16.msra.mxu0 0
    %1613 = vmatprep.subr.bf16.mxu0 0
    %1614 = vmatpush1.bf16.msra.mxu0 0
    %1615 = vmatprep.subr.bf16.mxu0 0
    %1616 = vmatpush1.bf16.msra.mxu0 %v1597
    %1617 = vmatprep.subr.bf16.mxu0 0
    %1618 = vmatpush1.bf16.msra.mxu0 %v1596
    %1619 = vmatprep.subr.bf16.mxu0 0
    %1620 = vmatpush2.bf16.msra.mxu0 0
    %1621 = vmatprep.subr.bf16.mxu0 0
    %1622 = vmatpush2.bf16.msra.mxu0 0
    %1623 = vmatprep.subr.bf16.mxu0 0
    %1624 = vmatpush2.bf16.msra.mxu0 0
    %1625 = vmatprep.subr.bf16.mxu0 0
    %1626 = vmatpush2.bf16.msra.mxu0 0
    %1627 = vmatprep.subr.bf16.mxu0 0
    %1628 = vmatpush2.bf16.msra.mxu0 0
    %1629 = vmatprep.subr.bf16.mxu0 0
    %1630 = vmatpush2.bf16.msra.mxu0 0
    %1631 = vmatprep.subr.bf16.mxu0 0
    %1632 = vmatpush2.bf16.msra.mxu0 0
    %1633 = vmatprep.subr.bf16.mxu0 0
    %1634 = vmatpush2.bf16.msra.mxu0 0
    %1635 = vmatprep.mubr.bf16.mxu0 0
    %1636 = vmatmul.mubr.bf16.gmra.mxu0 %v1601
    %v1637 = vpop.f32.mrf.mxu0
    %v1638 = vadd.f32 %v1583, %v1637
    %v1639 = vpop.f32.mrf.mxu0
    %v1640 = vpop.f32.mrf.mxu0
    %v1641 = vpop.f32.mrf.mxu0
    %1642 = vdwg.mxu0
    %vm1643 = vcmask 25600
    %1644 = vst.msk [vmem:[#allocation2] sm:$0x3] %vm1643, %v1638
    // Predicated region
    $region34: #{lstm_model_forward.1} parent=1 // pred_check
      _
    $region35: #{lstm_model_forward.1} parent=1 // pred_check_branch
      %1646 = sbr.rel (0) target = $region37
    $region36: #{lstm_model_forward.1} parent=1 // pred_region
      %s1648 = ssub.s32 32, 32
      %1649 = vsyncadd [#allocation3], %s1648
      %s1651 = sshll.u32 [#allocation2], 4
      %s1652 = int_to_ptr.vmem [resolvable:$true] %s1651
      %1654 = dma.vmem_to_hbm [thread:$0]  %s1652, 32, %s8, [#allocation3]
    $region37: #{lstm_model_forward.1} parent=1 // pred_fallthru
      _
    // Predicated region
    $region38: #{lstm_model_forward.1} parent=1 // pred_check
      _
    $region39: #{lstm_model_forward.1} parent=1 // pred_check_branch
      %1656 = sbr.rel (0) target = $region41
    $region40: #{lstm_model_forward.1} parent=1 // pred_region
      %1657 = dma.done [#allocation3], 32
    $region41: #{lstm_model_forward.1} parent=1 // pred_fallthru
      _
    %1658 = vsyncpa [#allocation3], 1

</llo_original>
